<compile_context>
chip_gen: v5e
topology: v5e:2x2
jax: 0.10.0
libtpu: 0.0.40
codegen_flags: <defaults>
</compile_context>

<pallas_src>
import functools
import numpy as np
import jax
import jax.numpy as jnp
from jax.experimental import pallas as pl
from jax.experimental.pallas import tpu as pltpu

LANE = 128


def _round_up(n, m):
    return (n + m - 1) // m * m


def _pad_to(a, target_shape):
    return jnp.pad(a, [(0, t - s) for s, t in zip(a.shape, target_shape)])


def _silu(x):
    return x * jax.nn.sigmoid(x)


# --------------------------- fused encoder kernel ---------------------------
def _encoder_kernel(x_ref,
                    iw_in, ib_in, iw_mid, ib_mid, iw_out, ib_out,
                    hw_in, hb_in, hw_mid, hb_mid, hw_out, hb_out,
                    out_ref, *, n_mid, n_latents, compute_dtype):
    """One row-tile of the whole encoder; everything stays resident in VMEM."""

    def dot(a, w):
        # MXU matmul: bf16 (or compute_dtype) operands, f32 accumulate.
        return jnp.dot(a.astype(compute_dtype), w,
                       preferred_element_type=jnp.float32)

    x = x_ref[...].astype(jnp.float32)

    # ---- in_block: Block(x_dim -> h_dim), residual=False ----
    h = _silu(dot(x, iw_in[...]) + ib_in[...])
    for l in range(n_mid):                       # static unroll, n_mid = n_layers-2
        h = _silu(dot(h, iw_mid[l]) + ib_mid[l])
    h = _silu(dot(h, iw_out[...]) + ib_out[...])

    # ---- h_blocks: Block(h_dim -> h_dim), residual=True ----
    for j in range(n_latents):                   # static unroll
        r = h
        t = _silu(dot(h, hw_in[j]) + hb_in[j])
        for l in range(n_mid):
            t = _silu(dot(t, hw_mid[j * n_mid + l]) + hb_mid[j * n_mid + l])
        t = _silu(dot(t, hw_out[j]) + hb_out[j])
        h = _silu(t + r)
        out_ref[j] = h.astype(out_ref.dtype)


# --------------------------- parameter preparation ---------------------------
def _prep_block(params, in_p, hid_p, out_p, wdtype):
    """Zero-pad a block's params to lane-dense (multiple-of-128) feature dims
    and cast weights to the matmul compute dtype.  Zero padding is exact:
    padded lanes stay exactly 0 through bias-add + SiLU + residual."""
    w_in, b_in, w_mid, b_mid, w_out, b_out = params
    n_mid = w_mid.shape[0]
    return (
        _pad_to(w_in,  (in_p, hid_p)).astype(wdtype),
        _pad_to(b_in,  (1, hid_p)).astype(jnp.float32),
        _pad_to(w_mid, (n_mid, hid_p, hid_p)).astype(wdtype),
        _pad_to(b_mid, (n_mid, 1, hid_p)).astype(jnp.float32),
        _pad_to(w_out, (hid_p, out_p)).astype(wdtype),
        _pad_to(b_out, (1, out_p)).astype(jnp.float32),
    )


def encoder_forward(x, in_block_params, h_blocks_params, x_dim, h_dim,
                    *, compute_dtype=jnp.bfloat16, max_tm=256):
    """Fused Pallas forward of Encoder. Returns list hs of (rows, h_dim)."""
    h2d = x.reshape(-1, x_dim)
    rows = h2d.shape[0]
    n_latents = len(h_blocks_params)
    hid_dim = in_block_params[0].shape[1]
    n_mid = in_block_params[2].shape[0]

    # residual blocks require in_dim == out_dim == h_dim (matches PyTorch assert)
    assert in_block_params[4].shape[1] == h_dim
    for p in h_blocks_params:
        assert p[0].shape[0] == h_dim and p[4].shape[1] == h_dim

    # lane-dense (multiple of 128) padded feature dims
    x_p = _round_up(x_dim, LANE)
    hd_p = _round_up(h_dim, LANE)
    hi_p = _round_up(hid_dim, LANE)

    # row tiling: big tiles, rows zero-padded to a tile multiple (no divisibility
    # requirement on the caller).  On v7x, rows large enough for >=2 grid steps
    # shard across both TensorCores via the "parallel" axis.
    rows8 = _round_up(max(rows, 8), 8)
    tm = min(max_tm, rows8)
    rows_p = _round_up(rows, tm)

    xin = _pad_to(h2d.astype(jnp.float32), (rows_p, x_p))

    iw_in, ib_in, iw_mid, ib_mid, iw_out, ib_out = _prep_block(
        in_block_params, x_p, hi_p, hd_p, compute_dtype)

    hb = [_prep_block(p, hd_p, hi_p, hd_p, compute_dtype) for p in h_blocks_params]
    hw_in = jnp.stack([p[0] for p in hb])                                  # (L, hd_p, hi_p)
    hb_in = jnp.stack([p[1] for p in hb])                                  # (L, 1, hi_p)
    hw_mid = jnp.stack([p[2] for p in hb]).reshape(n_latents * n_mid, hi_p, hi_p)
    hb_mid = jnp.stack([p[3] for p in hb]).reshape(n_latents * n_mid, 1, hi_p)
    hw_out = jnp.stack([p[4] for p in hb])                                 # (L, hi_p, hd_p)
    hb_out = jnp.stack([p[5] for p in hb])                                 # (L, 1, hd_p)

    # TODO(synk): for very large hid_dim on v7x (64 MiB VMEM) the stacked mid
    # weights should be streamed layer-by-layer (extra "arbitrary" grid axis /
    # emit_pipeline) instead of kept fully resident.

    kernel = functools.partial(_encoder_kernel, n_mid=n_mid,
                               n_latents=n_latents, compute_dtype=compute_dtype)

    out = pl.pallas_call(
        kernel,
        out_shape=jax.ShapeDtypeStruct((n_latents, rows_p, hd_p), x.dtype),
        grid_spec=pltpu.PrefetchScalarGridSpec(
            num_scalar_prefetch=0,
            grid=(rows_p // tm,),
            in_specs=[
                pl.BlockSpec((tm, x_p), lambda i: (i, 0)),
                # in_block weights/biases (grid-invariant)
                pl.BlockSpec((x_p, hi_p), lambda i: (0, 0)),
                pl.BlockSpec((1, hi_p), lambda i: (0, 0)),
                pl.BlockSpec((n_mid, hi_p, hi_p), lambda i: (0, 0, 0)),
                pl.BlockSpec((n_mid, 1, hi_p), lambda i: (0, 0, 0)),
                pl.BlockSpec((hi_p, hd_p), lambda i: (0, 0)),
                pl.BlockSpec((1, hd_p), lambda i: (0, 0)),
                # stacked h_block weights/biases (grid-invariant)
                pl.BlockSpec((n_latents, hd_p, hi_p), lambda i: (0, 0, 0)),
                pl.BlockSpec((n_latents, 1, hi_p), lambda i: (0, 0, 0)),
                pl.BlockSpec((n_latents * n_mid, hi_p, hi_p), lambda i: (0, 0, 0)),
                pl.BlockSpec((n_latents * n_mid, 1, hi_p), lambda i: (0, 0, 0)),
                pl.BlockSpec((n_latents, hi_p, hd_p), lambda i: (0, 0, 0)),
                pl.BlockSpec((n_latents, 1, hd_p), lambda i: (0, 0, 0)),
            ],
            out_specs=pl.BlockSpec((n_latents, tm, hd_p), lambda i: (0, i, 0)),
        ),
        compiler_params=pltpu.CompilerParams(
            dimension_semantics=("parallel",),
            vmem_limit_bytes=64 * 1024 * 1024),
    )(xin, iw_in, ib_in, iw_mid, ib_mid, iw_out, ib_out,
      hw_in, hb_in, hw_mid, hb_mid, hw_out, hb_out)

    # strip row / lane padding outside the kernel
    return [out[j, :rows, :h_dim] for j in range(n_latents)]


# ------------------------------- initialization ------------------------------
def init_block_params(key, in_dim, hid_dim, out_dim, n_layers, dtype=jnp.float32):
    """Deterministic Linear-style init (uniform ~ 1/sqrt(fan_in))."""
    assert n_layers > 2, "Block requires n_layers > 2 (matches the PyTorch assert)"
    n_mid = n_layers - 2
    ks = jax.random.split(key, 3)

    def lin(k, fi, fo):
        kw, kb = jax.random.split(k)
        lim = 1.0 / np.sqrt(fi)
        w = jax.random.uniform(kw, (fi, fo), dtype, -lim, lim)
        b = jax.random.uniform(kb, (1, fo), dtype, -lim, lim)
        return w, b

    w_in, b_in = lin(ks[0], in_dim, hid_dim)
    mids = [lin(k, hid_dim, hid_dim) for k in jax.random.split(ks[1], n_mid)]
    w_mid = jnp.stack([m[0] for m in mids])            # (n_mid, hid, hid)
    b_mid = jnp.stack([m[1] for m in mids])            # (n_mid, 1, hid)
    w_out, b_out = lin(ks[2], hid_dim, out_dim)
    return (w_in, b_in, w_mid, b_mid, w_out, b_out)


# ---------------- pure-JAX reference (same bf16-operand semantics) -----------
def _ref_block(x, params, residual, compute_dtype):
    w_in, b_in, w_mid, b_mid, w_out, b_out = params

    def dot(a, w):
        return jnp.dot(a.astype(compute_dtype), w.astype(compute_dtype),
                       preferred_element_type=jnp.float32)

    h = _silu(dot(x, w_in) + b_in)
    for l in range(w_mid.shape[0]):
        h = _silu(dot(h, w_mid[l]) + b_mid[l])
    out = _silu(dot(h, w_out) + b_out)
    return _silu(out + x) if residual else out


def _ref_encoder(x, in_p, h_ps, x_dim, compute_dtype):
    h = x.reshape(-1, x_dim).astype(jnp.float32)
    h = _ref_block(h, in_p, False, compute_dtype)
    hs = []
    for p in h_ps:
        h = _ref_block(h, p, True, compute_dtype)
        hs.append(h)
    return hs


if __name__ == "__main__":
    # Encoder(n_latents, x_dim, h_dim, hid_dim, n_layers)
    n_latents, x_dim, h_dim, hid_dim, n_layers = 2, 12, 32, 32, 3
    B, N = 2, 8                                   # x: (B, N, x_dim) -> rows = 16

    key = jax.random.PRNGKey(0)
    k_x, k_in, k_h = jax.random.split(key, 3)
    x = jax.random.normal(k_x, (B, N, x_dim), jnp.float32)

    in_block_params = init_block_params(k_in, x_dim, hid_dim, h_dim, n_layers)
    h_blocks_params = [
        init_block_params(k, h_dim, hid_dim, h_dim, n_layers)
        for k in jax.random.split(k_h, n_latents)
    ]

    hs = encoder_forward(x, in_block_params, h_blocks_params, x_dim, h_dim,
                         compute_dtype=jnp.bfloat16)
    hs = [jax.block_until_ready(h) for h in hs]

    # sanity check against pure-JAX reference with identical bf16-matmul semantics
    hs_ref = _ref_encoder(x, in_block_params, h_blocks_params, x_dim, jnp.bfloat16)
    for a, b in zip(hs, hs_ref):
        assert a.shape == (B * N, h_dim)
        np.testing.assert_allclose(np.asarray(a), np.asarray(b),
                                   rtol=1e-3, atol=1e-3)

    print("KERNEL_OK")
</pallas_src>

<mosaic_0001>
module attributes {stable_mosaic.version = 11 : i64} {
  func.func @_encoder_kernel(%arg0: i32, %arg1: memref<16x128xf32, #tpu.memory_space<vmem>>, %arg2: memref<128x128xbf16, #tpu.memory_space<vmem>>, %arg3: memref<1x128xf32, #tpu.memory_space<vmem>>, %arg4: memref<1x128x128xbf16, #tpu.memory_space<vmem>>, %arg5: memref<1x1x128xf32, #tpu.memory_space<vmem>>, %arg6: memref<128x128xbf16, #tpu.memory_space<vmem>>, %arg7: memref<1x128xf32, #tpu.memory_space<vmem>>, %arg8: memref<2x128x128xbf16, #tpu.memory_space<vmem>>, %arg9: memref<2x1x128xf32, #tpu.memory_space<vmem>>, %arg10: memref<2x128x128xbf16, #tpu.memory_space<vmem>>, %arg11: memref<2x1x128xf32, #tpu.memory_space<vmem>>, %arg12: memref<2x128x128xbf16, #tpu.memory_space<vmem>>, %arg13: memref<2x1x128xf32, #tpu.memory_space<vmem>>, %arg14: memref<2x16x128xf32, #tpu.memory_space<vmem>>) attributes {dimension_semantics = [#tpu.dimension_semantics<parallel>], iteration_bounds = array<i64: 1>, scalar_prefetch = 0 : i64, scratch_operands = 0 : i64, tpu.core_type = #tpu.core_type<tc>, window_params = [{transform_indices = @transform_0, window_bounds = array<i64: 16, 128>}, {pipeline_mode = #tpu.pipeline_mode<synchronous>, transform_indices = @transform_1, window_bounds = array<i64: 128, 128>}, {pipeline_mode = #tpu.pipeline_mode<synchronous>, transform_indices = @transform_2, window_bounds = array<i64: 1, 128>}, {pipeline_mode = #tpu.pipeline_mode<synchronous>, transform_indices = @transform_3, window_bounds = array<i64: 1, 128, 128>}, {pipeline_mode = #tpu.pipeline_mode<synchronous>, transform_indices = @transform_4, window_bounds = array<i64: 1, 1, 128>}, {pipeline_mode = #tpu.pipeline_mode<synchronous>, transform_indices = @transform_5, window_bounds = array<i64: 128, 128>}, {pipeline_mode = #tpu.pipeline_mode<synchronous>, transform_indices = @transform_6, window_bounds = array<i64: 1, 128>}, {pipeline_mode = #tpu.pipeline_mode<synchronous>, transform_indices = @transform_7, window_bounds = array<i64: 2, 128, 128>}, {pipeline_mode = #tpu.pipeline_mode<synchronous>, transform_indices = @transform_8, window_bounds = array<i64: 2, 1, 128>}, {pipeline_mode = #tpu.pipeline_mode<synchronous>, transform_indices = @transform_9, window_bounds = array<i64: 2, 128, 128>}, {pipeline_mode = #tpu.pipeline_mode<synchronous>, transform_indices = @transform_10, window_bounds = array<i64: 2, 1, 128>}, {pipeline_mode = #tpu.pipeline_mode<synchronous>, transform_indices = @transform_11, window_bounds = array<i64: 2, 128, 128>}, {pipeline_mode = #tpu.pipeline_mode<synchronous>, transform_indices = @transform_12, window_bounds = array<i64: 2, 1, 128>}, {transform_indices = @transform_13, window_bounds = array<i64: 2, 16, 128>}]} {
    %c0 = arith.constant 0 : index
    %c0_0 = arith.constant 0 : index
    %0 = vector.load %arg1[%c0, %c0_0] : memref<16x128xf32, #tpu.memory_space<vmem>>, vector<16x128xf32>
    %c0_1 = arith.constant 0 : index
    %c0_2 = arith.constant 0 : index
    %1 = vector.load %arg2[%c0_1, %c0_2] : memref<128x128xbf16, #tpu.memory_space<vmem>>, vector<128x128xbf16>
    %2 = arith.truncf %0 : vector<16x128xf32> to vector<16x128xbf16>
    %cst = arith.constant dense<0.000000e+00> : vector<16x128xf32>
    %3 = tpu.matmul %2, %1, %cst {dimension_numbers = #tpu.dot_dimension_numbers<[1], [0], [0], [1], [0, 0, 1, 1], [], []>} : vector<16x128xbf16>, vector<128x128xbf16>, vector<16x128xf32> -> vector<16x128xf32>
    %c0_3 = arith.constant 0 : index
    %c0_4 = arith.constant 0 : index
    %4 = vector.load %arg3[%c0_3, %c0_4] : memref<1x128xf32, #tpu.memory_space<vmem>>, vector<1x128xf32>
    %5 = vector.broadcast %4 : vector<1x128xf32> to vector<16x128xf32>
    %6 = arith.addf %3, %5 : vector<16x128xf32>
    %7 = arith.negf %6 : vector<16x128xf32>
    %8 = math.exp %7 : vector<16x128xf32>
    %cst_5 = arith.constant 1.000000e+00 : f32
    %9 = vector.broadcast %cst_5 : f32 to vector<16x128xf32>
    %10 = arith.addf %9, %8 : vector<16x128xf32>
    %11 = arith.divf %9, %10 : vector<16x128xf32>
    %12 = arith.mulf %6, %11 : vector<16x128xf32>
    %c0_6 = arith.constant 0 : index
    %c0_7 = arith.constant 0 : index
    %c0_8 = arith.constant 0 : index
    %13 = vector.load %arg4[%c0_6, %c0_7, %c0_8] : memref<1x128x128xbf16, #tpu.memory_space<vmem>>, vector<1x128x128xbf16>
    %14 = vector.shape_cast %13 : vector<1x128x128xbf16> to vector<128x128xbf16>
    %15 = arith.truncf %12 : vector<16x128xf32> to vector<16x128xbf16>
    %cst_9 = arith.constant dense<0.000000e+00> : vector<16x128xf32>
    %16 = tpu.matmul %15, %14, %cst_9 {dimension_numbers = #tpu.dot_dimension_numbers<[1], [0], [0], [1], [0, 0, 1, 1], [], []>} : vector<16x128xbf16>, vector<128x128xbf16>, vector<16x128xf32> -> vector<16x128xf32>
    %c0_10 = arith.constant 0 : index
    %c0_11 = arith.constant 0 : index
    %c0_12 = arith.constant 0 : index
    %17 = vector.load %arg5[%c0_10, %c0_11, %c0_12] : memref<1x1x128xf32, #tpu.memory_space<vmem>>, vector<1x1x128xf32>
    %18 = vector.shape_cast %17 : vector<1x1x128xf32> to vector<1x128xf32>
    %19 = vector.broadcast %18 : vector<1x128xf32> to vector<16x128xf32>
    %20 = arith.addf %16, %19 : vector<16x128xf32>
    %21 = arith.negf %20 : vector<16x128xf32>
    %22 = math.exp %21 : vector<16x128xf32>
    %cst_13 = arith.constant 1.000000e+00 : f32
    %23 = vector.broadcast %cst_13 : f32 to vector<16x128xf32>
    %24 = arith.addf %23, %22 : vector<16x128xf32>
    %25 = arith.divf %23, %24 : vector<16x128xf32>
    %26 = arith.mulf %20, %25 : vector<16x128xf32>
    %c0_14 = arith.constant 0 : index
    %c0_15 = arith.constant 0 : index
    %27 = vector.load %arg6[%c0_14, %c0_15] : memref<128x128xbf16, #tpu.memory_space<vmem>>, vector<128x128xbf16>
    %28 = arith.truncf %26 : vector<16x128xf32> to vector<16x128xbf16>
    %cst_16 = arith.constant dense<0.000000e+00> : vector<16x128xf32>
    %29 = tpu.matmul %28, %27, %cst_16 {dimension_numbers = #tpu.dot_dimension_numbers<[1], [0], [0], [1], [0, 0, 1, 1], [], []>} : vector<16x128xbf16>, vector<128x128xbf16>, vector<16x128xf32> -> vector<16x128xf32>
    %c0_17 = arith.constant 0 : index
    %c0_18 = arith.constant 0 : index
    %30 = vector.load %arg7[%c0_17, %c0_18] : memref<1x128xf32, #tpu.memory_space<vmem>>, vector<1x128xf32>
    %31 = vector.broadcast %30 : vector<1x128xf32> to vector<16x128xf32>
    %32 = arith.addf %29, %31 : vector<16x128xf32>
    %33 = arith.negf %32 : vector<16x128xf32>
    %34 = math.exp %33 : vector<16x128xf32>
    %cst_19 = arith.constant 1.000000e+00 : f32
    %35 = vector.broadcast %cst_19 : f32 to vector<16x128xf32>
    %36 = arith.addf %35, %34 : vector<16x128xf32>
    %37 = arith.divf %35, %36 : vector<16x128xf32>
    %38 = arith.mulf %32, %37 : vector<16x128xf32>
    %c0_20 = arith.constant 0 : index
    %c0_21 = arith.constant 0 : index
    %c0_22 = arith.constant 0 : index
    %39 = vector.load %arg8[%c0_20, %c0_21, %c0_22] : memref<2x128x128xbf16, #tpu.memory_space<vmem>>, vector<1x128x128xbf16>
    %40 = vector.shape_cast %39 : vector<1x128x128xbf16> to vector<128x128xbf16>
    %41 = arith.truncf %38 : vector<16x128xf32> to vector<16x128xbf16>
    %cst_23 = arith.constant dense<0.000000e+00> : vector<16x128xf32>
    %42 = tpu.matmul %41, %40, %cst_23 {dimension_numbers = #tpu.dot_dimension_numbers<[1], [0], [0], [1], [0, 0, 1, 1], [], []>} : vector<16x128xbf16>, vector<128x128xbf16>, vector<16x128xf32> -> vector<16x128xf32>
    %c0_24 = arith.constant 0 : index
    %c0_25 = arith.constant 0 : index
    %c0_26 = arith.constant 0 : index
    %43 = vector.load %arg9[%c0_24, %c0_25, %c0_26] : memref<2x1x128xf32, #tpu.memory_space<vmem>>, vector<1x1x128xf32>
    %44 = vector.shape_cast %43 : vector<1x1x128xf32> to vector<1x128xf32>
    %45 = vector.broadcast %44 : vector<1x128xf32> to vector<16x128xf32>
    %46 = arith.addf %42, %45 : vector<16x128xf32>
    %47 = arith.negf %46 : vector<16x128xf32>
    %48 = math.exp %47 : vector<16x128xf32>
    %cst_27 = arith.constant 1.000000e+00 : f32
    %49 = vector.broadcast %cst_27 : f32 to vector<16x128xf32>
    %50 = arith.addf %49, %48 : vector<16x128xf32>
    %51 = arith.divf %49, %50 : vector<16x128xf32>
    %52 = arith.mulf %46, %51 : vector<16x128xf32>
    %c0_28 = arith.constant 0 : index
    %c0_29 = arith.constant 0 : index
    %c0_30 = arith.constant 0 : index
    %53 = vector.load %arg10[%c0_28, %c0_29, %c0_30] : memref<2x128x128xbf16, #tpu.memory_space<vmem>>, vector<1x128x128xbf16>
    %54 = vector.shape_cast %53 : vector<1x128x128xbf16> to vector<128x128xbf16>
    %55 = arith.truncf %52 : vector<16x128xf32> to vector<16x128xbf16>
    %cst_31 = arith.constant dense<0.000000e+00> : vector<16x128xf32>
    %56 = tpu.matmul %55, %54, %cst_31 {dimension_numbers = #tpu.dot_dimension_numbers<[1], [0], [0], [1], [0, 0, 1, 1], [], []>} : vector<16x128xbf16>, vector<128x128xbf16>, vector<16x128xf32> -> vector<16x128xf32>
    %c0_32 = arith.constant 0 : index
    %c0_33 = arith.constant 0 : index
    %c0_34 = arith.constant 0 : index
    %57 = vector.load %arg11[%c0_32, %c0_33, %c0_34] : memref<2x1x128xf32, #tpu.memory_space<vmem>>, vector<1x1x128xf32>
    %58 = vector.shape_cast %57 : vector<1x1x128xf32> to vector<1x128xf32>
    %59 = vector.broadcast %58 : vector<1x128xf32> to vector<16x128xf32>
    %60 = arith.addf %56, %59 : vector<16x128xf32>
    %61 = arith.negf %60 : vector<16x128xf32>
    %62 = math.exp %61 : vector<16x128xf32>
    %cst_35 = arith.constant 1.000000e+00 : f32
    %63 = vector.broadcast %cst_35 : f32 to vector<16x128xf32>
    %64 = arith.addf %63, %62 : vector<16x128xf32>
    %65 = arith.divf %63, %64 : vector<16x128xf32>
    %66 = arith.mulf %60, %65 : vector<16x128xf32>
    %c0_36 = arith.constant 0 : index
    %c0_37 = arith.constant 0 : index
    %c0_38 = arith.constant 0 : index
    %67 = vector.load %arg12[%c0_36, %c0_37, %c0_38] : memref<2x128x128xbf16, #tpu.memory_space<vmem>>, vector<1x128x128xbf16>
    %68 = vector.shape_cast %67 : vector<1x128x128xbf16> to vector<128x128xbf16>
    %69 = arith.truncf %66 : vector<16x128xf32> to vector<16x128xbf16>
    %cst_39 = arith.constant dense<0.000000e+00> : vector<16x128xf32>
    %70 = tpu.matmul %69, %68, %cst_39 {dimension_numbers = #tpu.dot_dimension_numbers<[1], [0], [0], [1], [0, 0, 1, 1], [], []>} : vector<16x128xbf16>, vector<128x128xbf16>, vector<16x128xf32> -> vector<16x128xf32>
    %c0_40 = arith.constant 0 : index
    %c0_41 = arith.constant 0 : index
    %c0_42 = arith.constant 0 : index
    %71 = vector.load %arg13[%c0_40, %c0_41, %c0_42] : memref<2x1x128xf32, #tpu.memory_space<vmem>>, vector<1x1x128xf32>
    %72 = vector.shape_cast %71 : vector<1x1x128xf32> to vector<1x128xf32>
    %73 = vector.broadcast %72 : vector<1x128xf32> to vector<16x128xf32>
    %74 = arith.addf %70, %73 : vector<16x128xf32>
    %75 = arith.negf %74 : vector<16x128xf32>
    %76 = math.exp %75 : vector<16x128xf32>
    %cst_43 = arith.constant 1.000000e+00 : f32
    %77 = vector.broadcast %cst_43 : f32 to vector<16x128xf32>
    %78 = arith.addf %77, %76 : vector<16x128xf32>
    %79 = arith.divf %77, %78 : vector<16x128xf32>
    %80 = arith.mulf %74, %79 : vector<16x128xf32>
    %81 = arith.addf %80, %38 : vector<16x128xf32>
    %82 = arith.negf %81 : vector<16x128xf32>
    %83 = math.exp %82 : vector<16x128xf32>
    %cst_44 = arith.constant 1.000000e+00 : f32
    %84 = vector.broadcast %cst_44 : f32 to vector<16x128xf32>
    %85 = arith.addf %84, %83 : vector<16x128xf32>
    %86 = arith.divf %84, %85 : vector<16x128xf32>
    %87 = arith.mulf %81, %86 : vector<16x128xf32>
    %c0_45 = arith.constant 0 : index
    %c0_46 = arith.constant 0 : index
    %c0_47 = arith.constant 0 : index
    %88 = vector.load %arg14[%c0_45, %c0_46, %c0_47] : memref<2x16x128xf32, #tpu.memory_space<vmem>>, vector<1x16x128xf32>
    %89 = vector.shape_cast %88 : vector<1x16x128xf32> to vector<16x128xf32>
    %90 = vector.shape_cast %87 : vector<16x128xf32> to vector<1x16x128xf32>
    tpu.vector_store %arg14[%c0_45, %c0_46, %c0_47], %90 {strides = array<i32>} : memref<2x16x128xf32, #tpu.memory_space<vmem>>, vector<1x16x128xf32>,
    %c1 = arith.constant 1 : index
    %c0_48 = arith.constant 0 : index
    %c0_49 = arith.constant 0 : index
    %91 = vector.load %arg8[%c1, %c0_48, %c0_49] : memref<2x128x128xbf16, #tpu.memory_space<vmem>>, vector<1x128x128xbf16>
    %92 = vector.shape_cast %91 : vector<1x128x128xbf16> to vector<128x128xbf16>
    %93 = arith.truncf %87 : vector<16x128xf32> to vector<16x128xbf16>
    %cst_50 = arith.constant dense<0.000000e+00> : vector<16x128xf32>
    %94 = tpu.matmul %93, %92, %cst_50 {dimension_numbers = #tpu.dot_dimension_numbers<[1], [0], [0], [1], [0, 0, 1, 1], [], []>} : vector<16x128xbf16>, vector<128x128xbf16>, vector<16x128xf32> -> vector<16x128xf32>
    %c1_51 = arith.constant 1 : index
    %c0_52 = arith.constant 0 : index
    %c0_53 = arith.constant 0 : index
    %95 = vector.load %arg9[%c1_51, %c0_52, %c0_53] : memref<2x1x128xf32, #tpu.memory_space<vmem>>, vector<1x1x128xf32>
    %96 = vector.shape_cast %95 : vector<1x1x128xf32> to vector<1x128xf32>
    %97 = vector.broadcast %96 : vector<1x128xf32> to vector<16x128xf32>
    %98 = arith.addf %94, %97 : vector<16x128xf32>
    %99 = arith.negf %98 : vector<16x128xf32>
    %100 = math.exp %99 : vector<16x128xf32>
    %cst_54 = arith.constant 1.000000e+00 : f32
    %101 = vector.broadcast %cst_54 : f32 to vector<16x128xf32>
    %102 = arith.addf %101, %100 : vector<16x128xf32>
    %103 = arith.divf %101, %102 : vector<16x128xf32>
    %104 = arith.mulf %98, %103 : vector<16x128xf32>
    %c1_55 = arith.constant 1 : index
    %c0_56 = arith.constant 0 : index
    %c0_57 = arith.constant 0 : index
    %105 = vector.load %arg10[%c1_55, %c0_56, %c0_57] : memref<2x128x128xbf16, #tpu.memory_space<vmem>>, vector<1x128x128xbf16>
    %106 = vector.shape_cast %105 : vector<1x128x128xbf16> to vector<128x128xbf16>
    %107 = arith.truncf %104 : vector<16x128xf32> to vector<16x128xbf16>
    %cst_58 = arith.constant dense<0.000000e+00> : vector<16x128xf32>
    %108 = tpu.matmul %107, %106, %cst_58 {dimension_numbers = #tpu.dot_dimension_numbers<[1], [0], [0], [1], [0, 0, 1, 1], [], []>} : vector<16x128xbf16>, vector<128x128xbf16>, vector<16x128xf32> -> vector<16x128xf32>
    %c1_59 = arith.constant 1 : index
    %c0_60 = arith.constant 0 : index
    %c0_61 = arith.constant 0 : index
    %109 = vector.load %arg11[%c1_59, %c0_60, %c0_61] : memref<2x1x128xf32, #tpu.memory_space<vmem>>, vector<1x1x128xf32>
    %110 = vector.shape_cast %109 : vector<1x1x128xf32> to vector<1x128xf32>
    %111 = vector.broadcast %110 : vector<1x128xf32> to vector<16x128xf32>
    %112 = arith.addf %108, %111 : vector<16x128xf32>
    %113 = arith.negf %112 : vector<16x128xf32>
    %114 = math.exp %113 : vector<16x128xf32>
    %cst_62 = arith.constant 1.000000e+00 : f32
    %115 = vector.broadcast %cst_62 : f32 to vector<16x128xf32>
    %116 = arith.addf %115, %114 : vector<16x128xf32>
    %117 = arith.divf %115, %116 : vector<16x128xf32>
    %118 = arith.mulf %112, %117 : vector<16x128xf32>
    %c1_63 = arith.constant 1 : index
    %c0_64 = arith.constant 0 : index
    %c0_65 = arith.constant 0 : index
    %119 = vector.load %arg12[%c1_63, %c0_64, %c0_65] : memref<2x128x128xbf16, #tpu.memory_space<vmem>>, vector<1x128x128xbf16>
    %120 = vector.shape_cast %119 : vector<1x128x128xbf16> to vector<128x128xbf16>
    %121 = arith.truncf %118 : vector<16x128xf32> to vector<16x128xbf16>
    %cst_66 = arith.constant dense<0.000000e+00> : vector<16x128xf32>
    %122 = tpu.matmul %121, %120, %cst_66 {dimension_numbers = #tpu.dot_dimension_numbers<[1], [0], [0], [1], [0, 0, 1, 1], [], []>} : vector<16x128xbf16>, vector<128x128xbf16>, vector<16x128xf32> -> vector<16x128xf32>
    %c1_67 = arith.constant 1 : index
    %c0_68 = arith.constant 0 : index
    %c0_69 = arith.constant 0 : index
    %123 = vector.load %arg13[%c1_67, %c0_68, %c0_69] : memref<2x1x128xf32, #tpu.memory_space<vmem>>, vector<1x1x128xf32>
    %124 = vector.shape_cast %123 : vector<1x1x128xf32> to vector<1x128xf32>
    %125 = vector.broadcast %124 : vector<1x128xf32> to vector<16x128xf32>
    %126 = arith.addf %122, %125 : vector<16x128xf32>
    %127 = arith.negf %126 : vector<16x128xf32>
    %128 = math.exp %127 : vector<16x128xf32>
    %cst_70 = arith.constant 1.000000e+00 : f32
    %129 = vector.broadcast %cst_70 : f32 to vector<16x128xf32>
    %130 = arith.addf %129, %128 : vector<16x128xf32>
    %131 = arith.divf %129, %130 : vector<16x128xf32>
    %132 = arith.mulf %126, %131 : vector<16x128xf32>
    %133 = arith.addf %132, %87 : vector<16x128xf32>
    %134 = arith.negf %133 : vector<16x128xf32>
    %135 = math.exp %134 : vector<16x128xf32>
    %cst_71 = arith.constant 1.000000e+00 : f32
    %136 = vector.broadcast %cst_71 : f32 to vector<16x128xf32>
    %137 = arith.addf %136, %135 : vector<16x128xf32>
    %138 = arith.divf %136, %137 : vector<16x128xf32>
    %139 = arith.mulf %133, %138 : vector<16x128xf32>
    %c1_72 = arith.constant 1 : index
    %c0_73 = arith.constant 0 : index
    %c0_74 = arith.constant 0 : index
    %140 = vector.load %arg14[%c1_72, %c0_73, %c0_74] : memref<2x16x128xf32, #tpu.memory_space<vmem>>, vector<1x16x128xf32>
    %141 = vector.shape_cast %140 : vector<1x16x128xf32> to vector<16x128xf32>
    %142 = vector.shape_cast %139 : vector<16x128xf32> to vector<1x16x128xf32>
    tpu.vector_store %arg14[%c1_72, %c0_73, %c0_74], %142 {strides = array<i32>} : memref<2x16x128xf32, #tpu.memory_space<vmem>>, vector<1x16x128xf32>,
    return
  }
  func.func @transform_0(%arg0: i32) -> (i32, i32) {
    %c0_i32 = arith.constant 0 : i32
    %c0_i32_0 = arith.constant 0 : i32
    return %arg0, %c0_i32 : i32, i32
  }
  func.func @transform_1(%arg0: i32) -> (i32, i32) {
    %c0_i32 = arith.constant 0 : i32
    %c0_i32_0 = arith.constant 0 : i32
    %c0_i32_1 = arith.constant 0 : i32
    return %c0_i32, %c0_i32_0 : i32, i32
  }
  func.func @transform_2(%arg0: i32) -> (i32, i32) {
    %c0_i32 = arith.constant 0 : i32
    %c0_i32_0 = arith.constant 0 : i32
    %c0_i32_1 = arith.constant 0 : i32
    return %c0_i32, %c0_i32_0 : i32, i32
  }
  func.func @transform_3(%arg0: i32) -> (i32, i32, i32) {
    %c0_i32 = arith.constant 0 : i32
    %c0_i32_0 = arith.constant 0 : i32
    %c0_i32_1 = arith.constant 0 : i32
    %c0_i32_2 = arith.constant 0 : i32
    return %c0_i32, %c0_i32_0, %c0_i32_1 : i32, i32, i32
  }
  func.func @transform_4(%arg0: i32) -> (i32, i32, i32) {
    %c0_i32 = arith.constant 0 : i32
    %c0_i32_0 = arith.constant 0 : i32
    %c0_i32_1 = arith.constant 0 : i32
    %c0_i32_2 = arith.constant 0 : i32
    return %c0_i32, %c0_i32_0, %c0_i32_1 : i32, i32, i32
  }
  func.func @transform_5(%arg0: i32) -> (i32, i32) {
    %c0_i32 = arith.constant 0 : i32
    %c0_i32_0 = arith.constant 0 : i32
    %c0_i32_1 = arith.constant 0 : i32
    return %c0_i32, %c0_i32_0 : i32, i32
  }
  func.func @transform_6(%arg0: i32) -> (i32, i32) {
    %c0_i32 = arith.constant 0 : i32
    %c0_i32_0 = arith.constant 0 : i32
    %c0_i32_1 = arith.constant 0 : i32
    return %c0_i32, %c0_i32_0 : i32, i32
  }
  func.func @transform_7(%arg0: i32) -> (i32, i32, i32) {
    %c0_i32 = arith.constant 0 : i32
    %c0_i32_0 = arith.constant 0 : i32
    %c0_i32_1 = arith.constant 0 : i32
    %c0_i32_2 = arith.constant 0 : i32
    return %c0_i32, %c0_i32_0, %c0_i32_1 : i32, i32, i32
  }
  func.func @transform_8(%arg0: i32) -> (i32, i32, i32) {
    %c0_i32 = arith.constant 0 : i32
    %c0_i32_0 = arith.constant 0 : i32
    %c0_i32_1 = arith.constant 0 : i32
    %c0_i32_2 = arith.constant 0 : i32
    return %c0_i32, %c0_i32_0, %c0_i32_1 : i32, i32, i32
  }
  func.func @transform_9(%arg0: i32) -> (i32, i32, i32) {
    %c0_i32 = arith.constant 0 : i32
    %c0_i32_0 = arith.constant 0 : i32
    %c0_i32_1 = arith.constant 0 : i32
    %c0_i32_2 = arith.constant 0 : i32
    return %c0_i32, %c0_i32_0, %c0_i32_1 : i32, i32, i32
  }
  func.func @transform_10(%arg0: i32) -> (i32, i32, i32) {
    %c0_i32 = arith.constant 0 : i32
    %c0_i32_0 = arith.constant 0 : i32
    %c0_i32_1 = arith.constant 0 : i32
    %c0_i32_2 = arith.constant 0 : i32
    return %c0_i32, %c0_i32_0, %c0_i32_1 : i32, i32, i32
  }
  func.func @transform_11(%arg0: i32) -> (i32, i32, i32) {
    %c0_i32 = arith.constant 0 : i32
    %c0_i32_0 = arith.constant 0 : i32
    %c0_i32_1 = arith.constant 0 : i32
    %c0_i32_2 = arith.constant 0 : i32
    return %c0_i32, %c0_i32_0, %c0_i32_1 : i32, i32, i32
  }
  func.func @transform_12(%arg0: i32) -> (i32, i32, i32) {
    %c0_i32 = arith.constant 0 : i32
    %c0_i32_0 = arith.constant 0 : i32
    %c0_i32_1 = arith.constant 0 : i32
    %c0_i32_2 = arith.constant 0 : i32
    return %c0_i32, %c0_i32_0, %c0_i32_1 : i32, i32, i32
  }
  func.func @transform_13(%arg0: i32) -> (i32, i32, i32) {
    %c0_i32 = arith.constant 0 : i32
    %c0_i32_0 = arith.constant 0 : i32
    %c0_i32_1 = arith.constant 0 : i32
    return %c0_i32, %arg0, %c0_i32_0 : i32, i32, i32
  }
}

</mosaic_0001>

<llo_original>
// kernel: tpu_custom_call.1
$region0: #{tpu_custom_call.1}
  #allocation0 [shape = 'u32[]', space=smem, size = 0x4, offset = 0x4, fixed_abs, tag = 'smem constant byte address 0x4 - core index']
  #allocation1 [shape = 'u32[72,128]{1,0:T(1,128)}', space=vmem, size = 0x9000, scoped, tag = 'internal scratch']
  %s0 = inlined_call_operand.hbm [shape: f32[16,128], index: 0, kind: input, shape index: {}]
  %s1 = inlined_call_operand.hbm [shape: bf16[128,128], index: 1, kind: input, shape index: {}]
  %s2 = inlined_call_operand.hbm [shape: f32[1,128], index: 2, kind: input, shape index: {}]
  %s3 = inlined_call_operand.hbm [shape: bf16[1,128,128], index: 3, kind: input, shape index: {}]
  %s4 = inlined_call_operand.hbm [shape: f32[1,1,128], index: 4, kind: input, shape index: {}]
  %s5 = inlined_call_operand.hbm [shape: bf16[128,128], index: 5, kind: input, shape index: {}]
  %s6 = inlined_call_operand.hbm [shape: f32[1,128], index: 6, kind: input, shape index: {}]
  %s7 = inlined_call_operand.hbm [shape: bf16[2,128,128], index: 7, kind: input, shape index: {}]
  %s8 = inlined_call_operand.vmem [shape: f32[2,1,128], index: 8, kind: input, shape index: {}]
  %s9 = inlined_call_operand.hbm [shape: bf16[2,128,128], index: 9, kind: input, shape index: {}]
  %s10 = inlined_call_operand.vmem [shape: f32[2,1,128], index: 10, kind: input, shape index: {}]
  %s11 = inlined_call_operand.hbm [shape: bf16[2,128,128], index: 11, kind: input, shape index: {}]
  %s12 = inlined_call_operand.vmem [shape: f32[2,1,128], index: 12, kind: input, shape index: {}]
  %s13 = inlined_call_operand.hbm [shape: f32[2,16,128], index: 13, kind: output, shape index: {}]
  %s14 = sld [smem:[#allocation0]]
  $region102: #{tpu_custom_call.1} parent=0
    _
  %s16 = ssub.s32 1, %s14
  %s17 = scalar_select 0, %s16, %s14
  $region1: #{tpu_custom_call.1} parent=0
    #allocation2 [shape = 'u8[8192]{0}', space=vmem, size = 0x2000, scoped, tag = 'input window, operand 0, single buffered']
    #allocation3 [shape = 's32[1]{0}', space=sflag, size = 0x4, scoped, tag = 'scoped memory for tpu_custom_call.1']
    #allocation4 [shape = 's32[1]{0}', space=sflag, size = 0x4, scoped, tag = 'scoped memory for tpu_custom_call.1']
    #allocation5 [shape = 'u8[32768]{0}', space=vmem, size = 0x8000, scoped, tag = 'input window, operand 1, single buffered']
    #allocation6 [shape = 's32[1]{0}', space=sflag, size = 0x4, scoped, tag = 'scoped memory for tpu_custom_call.1']
    #allocation7 [shape = 'u8[512]{0}', space=vmem, size = 0x400, scoped, tag = 'input window, operand 2, single buffered']
    #allocation8 [shape = 'u8[32768]{0}', space=vmem, size = 0x8000, scoped, tag = 'input window, operand 3, single buffered']
    #allocation9 [shape = 's32[1]{0}', space=sflag, size = 0x4, scoped, tag = 'scoped memory for tpu_custom_call.1']
    #allocation10 [shape = 'u8[512]{0}', space=vmem, size = 0x400, scoped, tag = 'input window, operand 4, single buffered']
    #allocation11 [shape = 'u8[32768]{0}', space=vmem, size = 0x8000, scoped, tag = 'input window, operand 5, single buffered']
    #allocation12 [shape = 's32[1]{0}', space=sflag, size = 0x4, scoped, tag = 'scoped memory for tpu_custom_call.1']
    #allocation13 [shape = 'u8[512]{0}', space=vmem, size = 0x400, scoped, tag = 'input window, operand 6, single buffered']
    #allocation14 [shape = 'u8[65536]{0}', space=vmem, size = 0x10000, scoped, tag = 'input window, operand 7, single buffered']
    #allocation15 [shape = 's32[1]{0}', space=sflag, size = 0x4, scoped, tag = 'scoped memory for tpu_custom_call.1']
    #allocation16 [shape = 'u8[65536]{0}', space=vmem, size = 0x10000, scoped, tag = 'input window, operand 9, single buffered']
    #allocation17 [shape = 'u8[65536]{0}', space=vmem, size = 0x10000, scoped, tag = 'input window, operand 11, single buffered']
    #allocation18 [shape = 's32[1]{0}', space=sflag, size = 0x4, scoped, tag = 'scoped memory for tpu_custom_call.1']
    #allocation19 [shape = 'u8[16384]{0}', space=vmem, size = 0x4000, scoped, tag = 'output window, operand 0, single buffered']
    %18 = vsyncpa [#allocation3], 0
    %19 = vsyncpa [#allocation6], 0
    %20 = vsyncpa [#allocation9], 0
    %21 = vsyncpa [#allocation12], 0
    %22 = vsyncpa [#allocation15], 0
    %23 = vsyncpa [#allocation18], 0
    %24 = vsyncpa [#allocation4], 0
    // Predicated region
    $region2: #{tpu_custom_call.1} parent=1 // pred_check
      _
    $region3: #{tpu_custom_call.1} parent=1 // pred_check_branch
      %26 = sbr.rel (0) target = $region5
    $region4: #{tpu_custom_call.1} parent=1 // pred_region
      %28 = vsyncadd [#allocation3], 0
      %s29 = sshll.u32 %s0, 4
      %s30 = int_to_ptr.hbm [resolvable:$true] %s29
      %s31 = sshll.u32 [#allocation2], 4
      %s32 = int_to_ptr.vmem [resolvable:$true] %s31
      %37 = dma.hbm_to_vmem [thread:$0]  %s30, 256, %s32, [#allocation3], 128, 128, 8
    $region5: #{tpu_custom_call.1} parent=1 // pred_fallthru
      _
    // Predicated region
    $region6: #{tpu_custom_call.1} parent=1 // pred_check
      _
    $region7: #{tpu_custom_call.1} parent=1 // pred_check_branch
      %39 = sbr.rel (0) target = $region9
    $region8: #{tpu_custom_call.1} parent=1 // pred_region
      %41 = vsyncadd [#allocation6], 0
      %s42 = sshll.u32 %s1, 4
      %s43 = int_to_ptr.hbm [resolvable:$true] %s42
      %s44 = sshll.u32 [#allocation5], 4
      %s45 = int_to_ptr.vmem [resolvable:$true] %s44
      %50 = dma.hbm_to_vmem [thread:$0]  %s43, 1024, %s45, [#allocation6], 64, 64, 4
    $region9: #{tpu_custom_call.1} parent=1 // pred_fallthru
      _
    // Predicated region
    $region10: #{tpu_custom_call.1} parent=1 // pred_check
      _
    $region11: #{tpu_custom_call.1} parent=1 // pred_check_branch
      %52 = sbr.rel (0) target = $region13
    $region12: #{tpu_custom_call.1} parent=1 // pred_region
      %54 = vsyncadd [#allocation6], 0
      %s56 = sshll.u32 %s2, 4
      %s57 = int_to_ptr.hbm [resolvable:$true] %s56
      %s58 = sshll.u32 [#allocation7], 4
      %s59 = int_to_ptr.vmem [resolvable:$true] %s58
      %61 = dma.hbm_to_vmem [thread:$0]  %s57, 16, %s59, [#allocation6]
    $region13: #{tpu_custom_call.1} parent=1 // pred_fallthru
      _
    // Predicated region
    $region14: #{tpu_custom_call.1} parent=1 // pred_check
      _
    $region15: #{tpu_custom_call.1} parent=1 // pred_check_branch
      %63 = sbr.rel (0) target = $region17
    $region16: #{tpu_custom_call.1} parent=1 // pred_region
      %65 = vsyncadd [#allocation9], 0
      %s66 = sshll.u32 %s3, 4
      %s67 = int_to_ptr.hbm [resolvable:$true] %s66
      %s68 = sshll.u32 [#allocation8], 4
      %s69 = int_to_ptr.vmem [resolvable:$true] %s68
      %74 = dma.hbm_to_vmem [thread:$0]  %s67, 1024, %s69, [#allocation9], 64, 64, 4
    $region17: #{tpu_custom_call.1} parent=1 // pred_fallthru
      _
    // Predicated region
    $region18: #{tpu_custom_call.1} parent=1 // pred_check
      _
    $region19: #{tpu_custom_call.1} parent=1 // pred_check_branch
      %76 = sbr.rel (0) target = $region21
    $region20: #{tpu_custom_call.1} parent=1 // pred_region
      %78 = vsyncadd [#allocation9], 0
      %s80 = sshll.u32 %s4, 4
      %s81 = int_to_ptr.hbm [resolvable:$true] %s80
      %s82 = sshll.u32 [#allocation10], 4
      %s83 = int_to_ptr.vmem [resolvable:$true] %s82
      %85 = dma.hbm_to_vmem [thread:$0]  %s81, 16, %s83, [#allocation9]
    $region21: #{tpu_custom_call.1} parent=1 // pred_fallthru
      _
    // Predicated region
    $region22: #{tpu_custom_call.1} parent=1 // pred_check
      _
    $region23: #{tpu_custom_call.1} parent=1 // pred_check_branch
      %87 = sbr.rel (0) target = $region25
    $region24: #{tpu_custom_call.1} parent=1 // pred_region
      %89 = vsyncadd [#allocation12], 0
      %s90 = sshll.u32 %s5, 4
      %s91 = int_to_ptr.hbm [resolvable:$true] %s90
      %s92 = sshll.u32 [#allocation11], 4
      %s93 = int_to_ptr.vmem [resolvable:$true] %s92
      %98 = dma.hbm_to_vmem [thread:$0]  %s91, 1024, %s93, [#allocation12], 64, 64, 4
    $region25: #{tpu_custom_call.1} parent=1 // pred_fallthru
      _
    // Predicated region
    $region26: #{tpu_custom_call.1} parent=1 // pred_check
      _
    $region27: #{tpu_custom_call.1} parent=1 // pred_check_branch
      %100 = sbr.rel (0) target = $region29
    $region28: #{tpu_custom_call.1} parent=1 // pred_region
      %102 = vsyncadd [#allocation12], 0
      %s104 = sshll.u32 %s6, 4
      %s105 = int_to_ptr.hbm [resolvable:$true] %s104
      %s106 = sshll.u32 [#allocation13], 4
      %s107 = int_to_ptr.vmem [resolvable:$true] %s106
      %109 = dma.hbm_to_vmem [thread:$0]  %s105, 16, %s107, [#allocation12]
    $region29: #{tpu_custom_call.1} parent=1 // pred_fallthru
      _
    // Predicated region
    $region30: #{tpu_custom_call.1} parent=1 // pred_check
      _
    $region31: #{tpu_custom_call.1} parent=1 // pred_check_branch
      %111 = sbr.rel (0) target = $region33
    $region32: #{tpu_custom_call.1} parent=1 // pred_region
      %113 = vsyncadd [#allocation15], 0
      %s114 = sshll.u32 %s7, 4
      %s115 = int_to_ptr.hbm [resolvable:$true] %s114
      %s116 = sshll.u32 [#allocation14], 4
      %s117 = int_to_ptr.vmem [resolvable:$true] %s116
      %122 = dma.hbm_to_vmem [thread:$0]  %s115, 2048, %s117, [#allocation15], 64, 64, 4
    $region33: #{tpu_custom_call.1} parent=1 // pred_fallthru
      _
    // Predicated region
    $region34: #{tpu_custom_call.1} parent=1 // pred_check
      _
    $region35: #{tpu_custom_call.1} parent=1 // pred_check_branch
      %124 = sbr.rel (0) target = $region37
    $region36: #{tpu_custom_call.1} parent=1 // pred_region
      _
    $region37: #{tpu_custom_call.1} parent=1 // pred_fallthru
      _
    // Predicated region
    $region38: #{tpu_custom_call.1} parent=1 // pred_check
      _
    $region39: #{tpu_custom_call.1} parent=1 // pred_check_branch
      %126 = sbr.rel (0) target = $region41
    $region40: #{tpu_custom_call.1} parent=1 // pred_region
      %128 = vsyncadd [#allocation15], 0
      %s129 = sshll.u32 %s9, 4
      %s130 = int_to_ptr.hbm [resolvable:$true] %s129
      %s131 = sshll.u32 [#allocation16], 4
      %s132 = int_to_ptr.vmem [resolvable:$true] %s131
      %137 = dma.hbm_to_vmem [thread:$0]  %s130, 2048, %s132, [#allocation15], 64, 64, 4
    $region41: #{tpu_custom_call.1} parent=1 // pred_fallthru
      _
    // Predicated region
    $region42: #{tpu_custom_call.1} parent=1 // pred_check
      _
    $region43: #{tpu_custom_call.1} parent=1 // pred_check_branch
      %139 = sbr.rel (0) target = $region45
    $region44: #{tpu_custom_call.1} parent=1 // pred_region
      _
    $region45: #{tpu_custom_call.1} parent=1 // pred_fallthru
      _
    // Predicated region
    $region46: #{tpu_custom_call.1} parent=1 // pred_check
      _
    $region47: #{tpu_custom_call.1} parent=1 // pred_check_branch
      %141 = sbr.rel (0) target = $region49
    $region48: #{tpu_custom_call.1} parent=1 // pred_region
      %143 = vsyncadd [#allocation18], 0
      %s144 = sshll.u32 %s11, 4
      %s145 = int_to_ptr.hbm [resolvable:$true] %s144
      %s146 = sshll.u32 [#allocation17], 4
      %s147 = int_to_ptr.vmem [resolvable:$true] %s146
      %152 = dma.hbm_to_vmem [thread:$0]  %s145, 2048, %s147, [#allocation18], 64, 64, 4
    $region49: #{tpu_custom_call.1} parent=1 // pred_fallthru
      _
    // Predicated region
    $region50: #{tpu_custom_call.1} parent=1 // pred_check
      _
    $region51: #{tpu_custom_call.1} parent=1 // pred_check_branch
      %154 = sbr.rel (0) target = $region53
    $region52: #{tpu_custom_call.1} parent=1 // pred_region
      _
    $region53: #{tpu_custom_call.1} parent=1 // pred_fallthru
      _
    // Predicated region
    $region54: #{tpu_custom_call.1} parent=1 // pred_check
      _
    $region55: #{tpu_custom_call.1} parent=1 // pred_check_branch
      %156 = sbr.rel (0) target = $region57
    $region56: #{tpu_custom_call.1} parent=1 // pred_region
      %158 = dma.done [#allocation3], 256
    $region57: #{tpu_custom_call.1} parent=1 // pred_fallthru
      _
    // Predicated region
    $region58: #{tpu_custom_call.1} parent=1 // pred_check
      _
    $region59: #{tpu_custom_call.1} parent=1 // pred_check_branch
      %160 = sbr.rel (0) target = $region61
    $region60: #{tpu_custom_call.1} parent=1 // pred_region
      %162 = dma.done [#allocation6], 1024
    $region61: #{tpu_custom_call.1} parent=1 // pred_fallthru
      _
    // Predicated region
    $region62: #{tpu_custom_call.1} parent=1 // pred_check
      _
    $region63: #{tpu_custom_call.1} parent=1 // pred_check_branch
      %164 = sbr.rel (0) target = $region65
    $region64: #{tpu_custom_call.1} parent=1 // pred_region
      %166 = dma.done [#allocation6], 16
    $region65: #{tpu_custom_call.1} parent=1 // pred_fallthru
      _
    // Predicated region
    $region66: #{tpu_custom_call.1} parent=1 // pred_check
      _
    $region67: #{tpu_custom_call.1} parent=1 // pred_check_branch
      %168 = sbr.rel (0) target = $region69
    $region68: #{tpu_custom_call.1} parent=1 // pred_region
      %170 = dma.done [#allocation9], 1024
    $region69: #{tpu_custom_call.1} parent=1 // pred_fallthru
      _
    // Predicated region
    $region70: #{tpu_custom_call.1} parent=1 // pred_check
      _
    $region71: #{tpu_custom_call.1} parent=1 // pred_check_branch
      %172 = sbr.rel (0) target = $region73
    $region72: #{tpu_custom_call.1} parent=1 // pred_region
      %174 = dma.done [#allocation9], 16
    $region73: #{tpu_custom_call.1} parent=1 // pred_fallthru
      _
    // Predicated region
    $region74: #{tpu_custom_call.1} parent=1 // pred_check
      _
    $region75: #{tpu_custom_call.1} parent=1 // pred_check_branch
      %176 = sbr.rel (0) target = $region77
    $region76: #{tpu_custom_call.1} parent=1 // pred_region
      %178 = dma.done [#allocation12], 1024
    $region77: #{tpu_custom_call.1} parent=1 // pred_fallthru
      _
    // Predicated region
    $region78: #{tpu_custom_call.1} parent=1 // pred_check
      _
    $region79: #{tpu_custom_call.1} parent=1 // pred_check_branch
      %180 = sbr.rel (0) target = $region81
    $region80: #{tpu_custom_call.1} parent=1 // pred_region
      %182 = dma.done [#allocation12], 16
    $region81: #{tpu_custom_call.1} parent=1 // pred_fallthru
      _
    // Predicated region
    $region82: #{tpu_custom_call.1} parent=1 // pred_check
      _
    $region83: #{tpu_custom_call.1} parent=1 // pred_check_branch
      %184 = sbr.rel (0) target = $region85
    $region84: #{tpu_custom_call.1} parent=1 // pred_region
      %186 = dma.done [#allocation15], 2048
    $region85: #{tpu_custom_call.1} parent=1 // pred_fallthru
      _
    // Predicated region
    $region86: #{tpu_custom_call.1} parent=1 // pred_check
      _
    $region87: #{tpu_custom_call.1} parent=1 // pred_check_branch
      %188 = sbr.rel (0) target = $region89
    $region88: #{tpu_custom_call.1} parent=1 // pred_region
      %190 = dma.done [#allocation15], 2048
    $region89: #{tpu_custom_call.1} parent=1 // pred_fallthru
      _
    // Predicated region
    $region90: #{tpu_custom_call.1} parent=1 // pred_check
      _
    $region91: #{tpu_custom_call.1} parent=1 // pred_check_branch
      %192 = sbr.rel (0) target = $region93
    $region92: #{tpu_custom_call.1} parent=1 // pred_region
      %194 = dma.done [#allocation18], 2048
    $region93: #{tpu_custom_call.1} parent=1 // pred_fallthru
      _
    %v195 = vld [vmem:[#allocation2] sm:$0xff]
    %v196 = vld [vmem:[#allocation2 + $0x8] sm:$0xff]
    %v197 = vld [vmem:[#allocation5] sm:$0xf]
    %v198 = vld [vmem:[#allocation5 + $0x4] sm:$0xf]
    %v199 = vld [vmem:[#allocation5 + $0x8] sm:$0xf]
    %v200 = vld [vmem:[#allocation5 + $0xc] sm:$0xf]
    %v201 = vld [vmem:[#allocation5 + $0x10] sm:$0xf]
    %v202 = vld [vmem:[#allocation5 + $0x14] sm:$0xf]
    %v203 = vld [vmem:[#allocation5 + $0x18] sm:$0xf]
    %v204 = vld [vmem:[#allocation5 + $0x1c] sm:$0xf]
    %v205 = vld [vmem:[#allocation5 + $0x20] sm:$0xf]
    %v206 = vld [vmem:[#allocation5 + $0x24] sm:$0xf]
    %v207 = vld [vmem:[#allocation5 + $0x28] sm:$0xf]
    %v208 = vld [vmem:[#allocation5 + $0x2c] sm:$0xf]
    %v209 = vld [vmem:[#allocation5 + $0x30] sm:$0xf]
    %v210 = vld [vmem:[#allocation5 + $0x34] sm:$0xf]
    %v211 = vld [vmem:[#allocation5 + $0x38] sm:$0xf]
    %v212 = vld [vmem:[#allocation5 + $0x3c] sm:$0xf]
    %v213 = vpack.c.bf16 %v196, %v195
    %v214 = vld [vmem:[#allocation7] sm:$0x1]
    %v216 = vperm.slane %v214, 0
    %v234 = vunpack.c.l.b16 %v197
    %v235 = vunpack.c.l.b16 %v198
    %v236 = vunpack.c.l.b16 %v199
    %v237 = vunpack.c.l.b16 %v200
    %v238 = vunpack.c.l.b16 %v201
    %v239 = vunpack.c.l.b16 %v202
    %v240 = vunpack.c.l.b16 %v203
    %v241 = vunpack.c.l.b16 %v204
    %v242 = vunpack.c.l.b16 %v205
    %v243 = vunpack.c.l.b16 %v206
    %v244 = vunpack.c.l.b16 %v207
    %v245 = vunpack.c.l.b16 %v208
    %v246 = vunpack.c.l.b16 %v209
    %v247 = vunpack.c.l.b16 %v210
    %v248 = vunpack.c.l.b16 %v211
    %v249 = vunpack.c.l.b16 %v212
    %v250 = vpack.c.b16 %v235, %v234
    %v251 = vpack.c.b16 %v237, %v236
    %v252 = vpack.c.b16 %v239, %v238
    %v253 = vpack.c.b16 %v241, %v240
    %v254 = vpack.c.b16 %v243, %v242
    %v255 = vpack.c.b16 %v245, %v244
    %v256 = vpack.c.b16 %v247, %v246
    %v257 = vpack.c.b16 %v249, %v248
    %266 = vmatpush.bf16.msra.mxu0 %v257
    %267 = vmatpush.bf16.msra.mxu0 %v256
    %268 = vmatpush.bf16.msra.mxu0 %v255
    %269 = vmatpush.bf16.msra.mxu0 %v254
    %270 = vmatpush.bf16.msra.mxu0 %v253
    %271 = vmatpush.bf16.msra.mxu0 %v252
    %272 = vmatpush.bf16.msra.mxu0 %v251
    %273 = vmatpush.bf16.msra.mxu0 %v250
    %274 = vmatmul.bf16.gmra.mxu0 %v213
    %v275 = vpop.f32.mrf.mxu0
    %v276 = vadd.f32 %v216, %v275
    %v277 = vpop.f32.mrf.mxu0
    %v278 = vadd.f32 %v216, %v277
    %279 = vdwg.mxu0
    %v280 = vxor.u32 %v276, 2147483648
    %v281 = vxor.u32 %v278, 2147483648
    %v282 = vmul.f32 %v280, 1.442695
    %v283 = vpow.pop %v282
    %v284 = vmul.f32 %v281, 1.442695
    %v285 = vpow.pop %v284
    %v286 = vadd.f32 %v283, 1.0
    %v287 = vadd.f32 %v285, 1.0
    %v288 = vrcp.pop %v286
    %v289 = vmul.f32 %v286, %v288
    %v290 = vsub.f32 1.0, %v289
    %v291 = vmul.f32 %v288, %v290
    %v292 = vadd.f32 %v288, %v291
    %vm293 = vweird.f32 %v286
    %vm294 = vweird.f32 %v288
    %vm295 = vmor %vm293, %vm294
    %v296 = vsel %vm295, %v288, %v292
    %v297 = vand.u32 2147483647, %v286
    %vm298 = vcmp.eq.f32.partialorder %v297, 8.507059e+37
    %v299 = vand.u32 %v286, 2147483648
    %v300 = vor.u32 1.1754944e-38, %v299
    %v301 = vsel %vm298, %v300, %v296
    %v302 = vmul.f32 1.0, %v301
    %v303 = vrcp.pop %v287
    %v304 = vmul.f32 %v287, %v303
    %v305 = vsub.f32 1.0, %v304
    %v306 = vmul.f32 %v303, %v305
    %v307 = vadd.f32 %v303, %v306
    %vm308 = vweird.f32 %v287
    %vm309 = vweird.f32 %v303
    %vm310 = vmor %vm308, %vm309
    %v311 = vsel %vm310, %v303, %v307
    %v312 = vand.u32 2147483647, %v287
    %vm313 = vcmp.eq.f32.partialorder %v312, 8.507059e+37
    %v314 = vand.u32 %v287, 2147483648
    %v315 = vor.u32 1.1754944e-38, %v314
    %v316 = vsel %vm313, %v315, %v311
    %v317 = vmul.f32 1.0, %v316
    %v318 = vmul.f32 %v276, %v302
    %v319 = vmul.f32 %v278, %v317
    %v320 = vld [vmem:[#allocation8] sm:$0xf]
    %v321 = vld [vmem:[#allocation8 + $0x4] sm:$0xf]
    %v322 = vld [vmem:[#allocation8 + $0x8] sm:$0xf]
    %v323 = vld [vmem:[#allocation8 + $0xc] sm:$0xf]
    %v324 = vld [vmem:[#allocation8 + $0x10] sm:$0xf]
    %v325 = vld [vmem:[#allocation8 + $0x14] sm:$0xf]
    %v326 = vld [vmem:[#allocation8 + $0x18] sm:$0xf]
    %v327 = vld [vmem:[#allocation8 + $0x1c] sm:$0xf]
    %v328 = vld [vmem:[#allocation8 + $0x20] sm:$0xf]
    %v329 = vld [vmem:[#allocation8 + $0x24] sm:$0xf]
    %v330 = vld [vmem:[#allocation8 + $0x28] sm:$0xf]
    %v331 = vld [vmem:[#allocation8 + $0x2c] sm:$0xf]
    %v332 = vld [vmem:[#allocation8 + $0x30] sm:$0xf]
    %v333 = vld [vmem:[#allocation8 + $0x34] sm:$0xf]
    %v334 = vld [vmem:[#allocation8 + $0x38] sm:$0xf]
    %v335 = vld [vmem:[#allocation8 + $0x3c] sm:$0xf]
    %v336 = vpack.c.bf16 %v319, %v318
    %v337 = vld [vmem:[#allocation10] sm:$0x1]
    %v339 = vperm.slane %v337, 0
    %v357 = vunpack.c.l.b16 %v320
    %v358 = vunpack.c.l.b16 %v321
    %v359 = vunpack.c.l.b16 %v322
    %v360 = vunpack.c.l.b16 %v323
    %v361 = vunpack.c.l.b16 %v324
    %v362 = vunpack.c.l.b16 %v325
    %v363 = vunpack.c.l.b16 %v326
    %v364 = vunpack.c.l.b16 %v327
    %v365 = vunpack.c.l.b16 %v328
    %v366 = vunpack.c.l.b16 %v329
    %v367 = vunpack.c.l.b16 %v330
    %v368 = vunpack.c.l.b16 %v331
    %v369 = vunpack.c.l.b16 %v332
    %v370 = vunpack.c.l.b16 %v333
    %v371 = vunpack.c.l.b16 %v334
    %v372 = vunpack.c.l.b16 %v335
    %v373 = vpack.c.b16 %v358, %v357
    %v374 = vpack.c.b16 %v360, %v359
    %v375 = vpack.c.b16 %v362, %v361
    %v376 = vpack.c.b16 %v364, %v363
    %v377 = vpack.c.b16 %v366, %v365
    %v378 = vpack.c.b16 %v368, %v367
    %v379 = vpack.c.b16 %v370, %v369
    %v380 = vpack.c.b16 %v372, %v371
    %389 = vmatpush.bf16.msra.mxu0 %v380
    %390 = vmatpush.bf16.msra.mxu0 %v379
    %391 = vmatpush.bf16.msra.mxu0 %v378
    %392 = vmatpush.bf16.msra.mxu0 %v377
    %393 = vmatpush.bf16.msra.mxu0 %v376
    %394 = vmatpush.bf16.msra.mxu0 %v375
    %395 = vmatpush.bf16.msra.mxu0 %v374
    %396 = vmatpush.bf16.msra.mxu0 %v373
    %397 = vmatmul.bf16.gmra.mxu0 %v336
    %v398 = vpop.f32.mrf.mxu0
    %v399 = vadd.f32 %v339, %v398
    %v400 = vpop.f32.mrf.mxu0
    %v401 = vadd.f32 %v339, %v400
    %402 = vdwg.mxu0
    %v403 = vxor.u32 %v399, 2147483648
    %v404 = vxor.u32 %v401, 2147483648
    %v405 = vmul.f32 %v403, 1.442695
    %v406 = vpow.pop %v405
    %v407 = vmul.f32 %v404, 1.442695
    %v408 = vpow.pop %v407
    %v409 = vadd.f32 %v406, 1.0
    %v410 = vadd.f32 %v408, 1.0
    %v411 = vrcp.pop %v409
    %v412 = vmul.f32 %v409, %v411
    %v413 = vsub.f32 1.0, %v412
    %v414 = vmul.f32 %v411, %v413
    %v415 = vadd.f32 %v411, %v414
    %vm416 = vweird.f32 %v409
    %vm417 = vweird.f32 %v411
    %vm418 = vmor %vm416, %vm417
    %v419 = vsel %vm418, %v411, %v415
    %v420 = vand.u32 2147483647, %v409
    %vm421 = vcmp.eq.f32.partialorder %v420, 8.507059e+37
    %v422 = vand.u32 %v409, 2147483648
    %v423 = vor.u32 1.1754944e-38, %v422
    %v424 = vsel %vm421, %v423, %v419
    %v425 = vmul.f32 1.0, %v424
    %v426 = vrcp.pop %v410
    %v427 = vmul.f32 %v410, %v426
    %v428 = vsub.f32 1.0, %v427
    %v429 = vmul.f32 %v426, %v428
    %v430 = vadd.f32 %v426, %v429
    %vm431 = vweird.f32 %v410
    %vm432 = vweird.f32 %v426
    %vm433 = vmor %vm431, %vm432
    %v434 = vsel %vm433, %v426, %v430
    %v435 = vand.u32 2147483647, %v410
    %vm436 = vcmp.eq.f32.partialorder %v435, 8.507059e+37
    %v437 = vand.u32 %v410, 2147483648
    %v438 = vor.u32 1.1754944e-38, %v437
    %v439 = vsel %vm436, %v438, %v434
    %v440 = vmul.f32 1.0, %v439
    %v441 = vmul.f32 %v399, %v425
    %v442 = vmul.f32 %v401, %v440
    %v443 = vld [vmem:[#allocation11] sm:$0xf]
    %v444 = vld [vmem:[#allocation11 + $0x4] sm:$0xf]
    %v445 = vld [vmem:[#allocation11 + $0x8] sm:$0xf]
    %v446 = vld [vmem:[#allocation11 + $0xc] sm:$0xf]
    %v447 = vld [vmem:[#allocation11 + $0x10] sm:$0xf]
    %v448 = vld [vmem:[#allocation11 + $0x14] sm:$0xf]
    %v449 = vld [vmem:[#allocation11 + $0x18] sm:$0xf]
    %v450 = vld [vmem:[#allocation11 + $0x1c] sm:$0xf]
    %v451 = vld [vmem:[#allocation11 + $0x20] sm:$0xf]
    %v452 = vld [vmem:[#allocation11 + $0x24] sm:$0xf]
    %v453 = vld [vmem:[#allocation11 + $0x28] sm:$0xf]
    %v454 = vld [vmem:[#allocation11 + $0x2c] sm:$0xf]
    %v455 = vld [vmem:[#allocation11 + $0x30] sm:$0xf]
    %v456 = vld [vmem:[#allocation11 + $0x34] sm:$0xf]
    %v457 = vld [vmem:[#allocation11 + $0x38] sm:$0xf]
    %v458 = vld [vmem:[#allocation11 + $0x3c] sm:$0xf]
    %v459 = vpack.c.bf16 %v442, %v441
    %v460 = vld [vmem:[#allocation13] sm:$0x1]
    %v462 = vperm.slane %v460, 0
    %v480 = vunpack.c.l.b16 %v443
    %v481 = vunpack.c.l.b16 %v444
    %v482 = vunpack.c.l.b16 %v445
    %v483 = vunpack.c.l.b16 %v446
    %v484 = vunpack.c.l.b16 %v447
    %v485 = vunpack.c.l.b16 %v448
    %v486 = vunpack.c.l.b16 %v449
    %v487 = vunpack.c.l.b16 %v450
    %v488 = vunpack.c.l.b16 %v451
    %v489 = vunpack.c.l.b16 %v452
    %v490 = vunpack.c.l.b16 %v453
    %v491 = vunpack.c.l.b16 %v454
    %v492 = vunpack.c.l.b16 %v455
    %v493 = vunpack.c.l.b16 %v456
    %v494 = vunpack.c.l.b16 %v457
    %v495 = vunpack.c.l.b16 %v458
    %v496 = vpack.c.b16 %v481, %v480
    %v497 = vpack.c.b16 %v483, %v482
    %v498 = vpack.c.b16 %v485, %v484
    %v499 = vpack.c.b16 %v487, %v486
    %v500 = vpack.c.b16 %v489, %v488
    %v501 = vpack.c.b16 %v491, %v490
    %v502 = vpack.c.b16 %v493, %v492
    %v503 = vpack.c.b16 %v495, %v494
    %512 = vmatpush.bf16.msra.mxu0 %v503
    %513 = vmatpush.bf16.msra.mxu0 %v502
    %514 = vmatpush.bf16.msra.mxu0 %v501
    %515 = vmatpush.bf16.msra.mxu0 %v500
    %516 = vmatpush.bf16.msra.mxu0 %v499
    %517 = vmatpush.bf16.msra.mxu0 %v498
    %518 = vmatpush.bf16.msra.mxu0 %v497
    %519 = vmatpush.bf16.msra.mxu0 %v496
    %520 = vmatmul.bf16.gmra.mxu0 %v459
    %v521 = vpop.f32.mrf.mxu0
    %v522 = vadd.f32 %v462, %v521
    %v523 = vpop.f32.mrf.mxu0
    %v524 = vadd.f32 %v462, %v523
    %525 = vdwg.mxu0
    %v526 = vxor.u32 %v522, 2147483648
    %v527 = vxor.u32 %v524, 2147483648
    %v528 = vmul.f32 %v526, 1.442695
    %v529 = vpow.pop %v528
    %v530 = vmul.f32 %v527, 1.442695
    %v531 = vpow.pop %v530
    %v532 = vadd.f32 %v529, 1.0
    %v533 = vadd.f32 %v531, 1.0
    %v534 = vrcp.pop %v532
    %v535 = vmul.f32 %v532, %v534
    %v536 = vsub.f32 1.0, %v535
    %v537 = vmul.f32 %v534, %v536
    %v538 = vadd.f32 %v534, %v537
    %vm539 = vweird.f32 %v532
    %vm540 = vweird.f32 %v534
    %vm541 = vmor %vm539, %vm540
    %v542 = vsel %vm541, %v534, %v538
    %v543 = vand.u32 2147483647, %v532
    %vm544 = vcmp.eq.f32.partialorder %v543, 8.507059e+37
    %v545 = vand.u32 %v532, 2147483648
    %v546 = vor.u32 1.1754944e-38, %v545
    %v547 = vsel %vm544, %v546, %v542
    %v548 = vmul.f32 1.0, %v547
    %v549 = vrcp.pop %v533
    %v550 = vmul.f32 %v533, %v549
    %v551 = vsub.f32 1.0, %v550
    %v552 = vmul.f32 %v549, %v551
    %v553 = vadd.f32 %v549, %v552
    %vm554 = vweird.f32 %v533
    %vm555 = vweird.f32 %v549
    %vm556 = vmor %vm554, %vm555
    %v557 = vsel %vm556, %v549, %v553
    %v558 = vand.u32 2147483647, %v533
    %vm559 = vcmp.eq.f32.partialorder %v558, 8.507059e+37
    %v560 = vand.u32 %v533, 2147483648
    %v561 = vor.u32 1.1754944e-38, %v560
    %v562 = vsel %vm559, %v561, %v557
    %v563 = vmul.f32 1.0, %v562
    %v564 = vmul.f32 %v522, %v548
    %v565 = vmul.f32 %v524, %v563
    %v566 = vld [vmem:[#allocation14] sm:$0xf]
    %v567 = vld [vmem:[#allocation14 + $0x4] sm:$0xf]
    %v568 = vld [vmem:[#allocation14 + $0x8] sm:$0xf]
    %v569 = vld [vmem:[#allocation14 + $0xc] sm:$0xf]
    %v570 = vld [vmem:[#allocation14 + $0x10] sm:$0xf]
    %v571 = vld [vmem:[#allocation14 + $0x14] sm:$0xf]
    %v572 = vld [vmem:[#allocation14 + $0x18] sm:$0xf]
    %v573 = vld [vmem:[#allocation14 + $0x1c] sm:$0xf]
    %v574 = vld [vmem:[#allocation14 + $0x20] sm:$0xf]
    %v575 = vld [vmem:[#allocation14 + $0x24] sm:$0xf]
    %v576 = vld [vmem:[#allocation14 + $0x28] sm:$0xf]
    %v577 = vld [vmem:[#allocation14 + $0x2c] sm:$0xf]
    %v578 = vld [vmem:[#allocation14 + $0x30] sm:$0xf]
    %v579 = vld [vmem:[#allocation14 + $0x34] sm:$0xf]
    %v580 = vld [vmem:[#allocation14 + $0x38] sm:$0xf]
    %v581 = vld [vmem:[#allocation14 + $0x3c] sm:$0xf]
    %v582 = vpack.c.bf16 %v565, %v564
    %v583 = vld [vmem:[%s8] sm:$0x1]
    %v585 = vperm.slane %v583, 0
    %v603 = vunpack.c.l.b16 %v566
    %v604 = vunpack.c.l.b16 %v567
    %v605 = vunpack.c.l.b16 %v568
    %v606 = vunpack.c.l.b16 %v569
    %v607 = vunpack.c.l.b16 %v570
    %v608 = vunpack.c.l.b16 %v571
    %v609 = vunpack.c.l.b16 %v572
    %v610 = vunpack.c.l.b16 %v573
    %v611 = vunpack.c.l.b16 %v574
    %v612 = vunpack.c.l.b16 %v575
    %v613 = vunpack.c.l.b16 %v576
    %v614 = vunpack.c.l.b16 %v577
    %v615 = vunpack.c.l.b16 %v578
    %v616 = vunpack.c.l.b16 %v579
    %v617 = vunpack.c.l.b16 %v580
    %v618 = vunpack.c.l.b16 %v581
    %v619 = vpack.c.b16 %v604, %v603
    %v620 = vpack.c.b16 %v606, %v605
    %v621 = vpack.c.b16 %v608, %v607
    %v622 = vpack.c.b16 %v610, %v609
    %v623 = vpack.c.b16 %v612, %v611
    %v624 = vpack.c.b16 %v614, %v613
    %v625 = vpack.c.b16 %v616, %v615
    %v626 = vpack.c.b16 %v618, %v617
    %635 = vmatpush.bf16.msra.mxu0 %v626
    %636 = vmatpush.bf16.msra.mxu0 %v625
    %637 = vmatpush.bf16.msra.mxu0 %v624
    %638 = vmatpush.bf16.msra.mxu0 %v623
    %639 = vmatpush.bf16.msra.mxu0 %v622
    %640 = vmatpush.bf16.msra.mxu0 %v621
    %641 = vmatpush.bf16.msra.mxu0 %v620
    %642 = vmatpush.bf16.msra.mxu0 %v619
    %643 = vmatmul.bf16.gmra.mxu0 %v582
    %v644 = vpop.f32.mrf.mxu0
    %v645 = vadd.f32 %v585, %v644
    %v646 = vpop.f32.mrf.mxu0
    %v647 = vadd.f32 %v585, %v646
    %648 = vdwg.mxu0
    %v649 = vxor.u32 %v645, 2147483648
    %v650 = vxor.u32 %v647, 2147483648
    %v651 = vmul.f32 %v649, 1.442695
    %v652 = vpow.pop %v651
    %v653 = vmul.f32 %v650, 1.442695
    %v654 = vpow.pop %v653
    %v655 = vadd.f32 %v652, 1.0
    %v656 = vadd.f32 %v654, 1.0
    %v657 = vrcp.pop %v655
    %v658 = vmul.f32 %v655, %v657
    %v659 = vsub.f32 1.0, %v658
    %v660 = vmul.f32 %v657, %v659
    %v661 = vadd.f32 %v657, %v660
    %vm662 = vweird.f32 %v655
    %vm663 = vweird.f32 %v657
    %vm664 = vmor %vm662, %vm663
    %v665 = vsel %vm664, %v657, %v661
    %v666 = vand.u32 2147483647, %v655
    %vm667 = vcmp.eq.f32.partialorder %v666, 8.507059e+37
    %v668 = vand.u32 %v655, 2147483648
    %v669 = vor.u32 1.1754944e-38, %v668
    %v670 = vsel %vm667, %v669, %v665
    %v671 = vmul.f32 1.0, %v670
    %v672 = vrcp.pop %v656
    %v673 = vmul.f32 %v656, %v672
    %v674 = vsub.f32 1.0, %v673
    %v675 = vmul.f32 %v672, %v674
    %v676 = vadd.f32 %v672, %v675
    %vm677 = vweird.f32 %v656
    %vm678 = vweird.f32 %v672
    %vm679 = vmor %vm677, %vm678
    %v680 = vsel %vm679, %v672, %v676
    %v681 = vand.u32 2147483647, %v656
    %vm682 = vcmp.eq.f32.partialorder %v681, 8.507059e+37
    %v683 = vand.u32 %v656, 2147483648
    %v684 = vor.u32 1.1754944e-38, %v683
    %v685 = vsel %vm682, %v684, %v680
    %v686 = vmul.f32 1.0, %v685
    %v687 = vmul.f32 %v645, %v671
    %v688 = vmul.f32 %v647, %v686
    %v689 = vld [vmem:[#allocation16] sm:$0xf]
    %v690 = vld [vmem:[#allocation16 + $0x4] sm:$0xf]
    %v691 = vld [vmem:[#allocation16 + $0x8] sm:$0xf]
    %v692 = vld [vmem:[#allocation16 + $0xc] sm:$0xf]
    %v693 = vld [vmem:[#allocation16 + $0x10] sm:$0xf]
    %v694 = vld [vmem:[#allocation16 + $0x14] sm:$0xf]
    %v695 = vld [vmem:[#allocation16 + $0x18] sm:$0xf]
    %v696 = vld [vmem:[#allocation16 + $0x1c] sm:$0xf]
    %v697 = vld [vmem:[#allocation16 + $0x20] sm:$0xf]
    %v698 = vld [vmem:[#allocation16 + $0x24] sm:$0xf]
    %v699 = vld [vmem:[#allocation16 + $0x28] sm:$0xf]
    %v700 = vld [vmem:[#allocation16 + $0x2c] sm:$0xf]
    %v701 = vld [vmem:[#allocation16 + $0x30] sm:$0xf]
    %v702 = vld [vmem:[#allocation16 + $0x34] sm:$0xf]
    %v703 = vld [vmem:[#allocation16 + $0x38] sm:$0xf]
    %v704 = vld [vmem:[#allocation16 + $0x3c] sm:$0xf]
    %v705 = vpack.c.bf16 %v688, %v687
    %v706 = vld [vmem:[%s10] sm:$0x1]
    %v708 = vperm.slane %v706, 0
    %v726 = vunpack.c.l.b16 %v689
    %v727 = vunpack.c.l.b16 %v690
    %v728 = vunpack.c.l.b16 %v691
    %v729 = vunpack.c.l.b16 %v692
    %v730 = vunpack.c.l.b16 %v693
    %v731 = vunpack.c.l.b16 %v694
    %v732 = vunpack.c.l.b16 %v695
    %v733 = vunpack.c.l.b16 %v696
    %v734 = vunpack.c.l.b16 %v697
    %v735 = vunpack.c.l.b16 %v698
    %v736 = vunpack.c.l.b16 %v699
    %v737 = vunpack.c.l.b16 %v700
    %v738 = vunpack.c.l.b16 %v701
    %v739 = vunpack.c.l.b16 %v702
    %v740 = vunpack.c.l.b16 %v703
    %v741 = vunpack.c.l.b16 %v704
    %v742 = vpack.c.b16 %v727, %v726
    %v743 = vpack.c.b16 %v729, %v728
    %v744 = vpack.c.b16 %v731, %v730
    %v745 = vpack.c.b16 %v733, %v732
    %v746 = vpack.c.b16 %v735, %v734
    %v747 = vpack.c.b16 %v737, %v736
    %v748 = vpack.c.b16 %v739, %v738
    %v749 = vpack.c.b16 %v741, %v740
    %758 = vmatpush.bf16.msra.mxu0 %v749
    %759 = vmatpush.bf16.msra.mxu0 %v748
    %760 = vmatpush.bf16.msra.mxu0 %v747
    %761 = vmatpush.bf16.msra.mxu0 %v746
    %762 = vmatpush.bf16.msra.mxu0 %v745
    %763 = vmatpush.bf16.msra.mxu0 %v744
    %764 = vmatpush.bf16.msra.mxu0 %v743
    %765 = vmatpush.bf16.msra.mxu0 %v742
    %766 = vmatmul.bf16.gmra.mxu0 %v705
    %v767 = vpop.f32.mrf.mxu0
    %v768 = vadd.f32 %v708, %v767
    %v769 = vpop.f32.mrf.mxu0
    %v770 = vadd.f32 %v708, %v769
    %771 = vdwg.mxu0
    %v772 = vxor.u32 %v768, 2147483648
    %v773 = vxor.u32 %v770, 2147483648
    %v774 = vmul.f32 %v772, 1.442695
    %v775 = vpow.pop %v774
    %v776 = vmul.f32 %v773, 1.442695
    %v777 = vpow.pop %v776
    %v778 = vadd.f32 %v775, 1.0
    %v779 = vadd.f32 %v777, 1.0
    %v780 = vrcp.pop %v778
    %v781 = vmul.f32 %v778, %v780
    %v782 = vsub.f32 1.0, %v781
    %v783 = vmul.f32 %v780, %v782
    %v784 = vadd.f32 %v780, %v783
    %vm785 = vweird.f32 %v778
    %vm786 = vweird.f32 %v780
    %vm787 = vmor %vm785, %vm786
    %v788 = vsel %vm787, %v780, %v784
    %v789 = vand.u32 2147483647, %v778
    %vm790 = vcmp.eq.f32.partialorder %v789, 8.507059e+37
    %v791 = vand.u32 %v778, 2147483648
    %v792 = vor.u32 1.1754944e-38, %v791
    %v793 = vsel %vm790, %v792, %v788
    %v794 = vmul.f32 1.0, %v793
    %v795 = vrcp.pop %v779
    %v796 = vmul.f32 %v779, %v795
    %v797 = vsub.f32 1.0, %v796
    %v798 = vmul.f32 %v795, %v797
    %v799 = vadd.f32 %v795, %v798
    %vm800 = vweird.f32 %v779
    %vm801 = vweird.f32 %v795
    %vm802 = vmor %vm800, %vm801
    %v803 = vsel %vm802, %v795, %v799
    %v804 = vand.u32 2147483647, %v779
    %vm805 = vcmp.eq.f32.partialorder %v804, 8.507059e+37
    %v806 = vand.u32 %v779, 2147483648
    %v807 = vor.u32 1.1754944e-38, %v806
    %v808 = vsel %vm805, %v807, %v803
    %v809 = vmul.f32 1.0, %v808
    %v810 = vmul.f32 %v768, %v794
    %v811 = vmul.f32 %v770, %v809
    %v812 = vld [vmem:[#allocation17] sm:$0xf]
    %v813 = vld [vmem:[#allocation17 + $0x4] sm:$0xf]
    %v814 = vld [vmem:[#allocation17 + $0x8] sm:$0xf]
    %v815 = vld [vmem:[#allocation17 + $0xc] sm:$0xf]
    %v816 = vld [vmem:[#allocation17 + $0x10] sm:$0xf]
    %v817 = vld [vmem:[#allocation17 + $0x14] sm:$0xf]
    %v818 = vld [vmem:[#allocation17 + $0x18] sm:$0xf]
    %v819 = vld [vmem:[#allocation17 + $0x1c] sm:$0xf]
    %v820 = vld [vmem:[#allocation17 + $0x20] sm:$0xf]
    %v821 = vld [vmem:[#allocation17 + $0x24] sm:$0xf]
    %v822 = vld [vmem:[#allocation17 + $0x28] sm:$0xf]
    %v823 = vld [vmem:[#allocation17 + $0x2c] sm:$0xf]
    %v824 = vld [vmem:[#allocation17 + $0x30] sm:$0xf]
    %v825 = vld [vmem:[#allocation17 + $0x34] sm:$0xf]
    %v826 = vld [vmem:[#allocation17 + $0x38] sm:$0xf]
    %v827 = vld [vmem:[#allocation17 + $0x3c] sm:$0xf]
    %v828 = vpack.c.bf16 %v811, %v810
    %v829 = vld [vmem:[%s12] sm:$0x1]
    %v831 = vperm.slane %v829, 0
    %v849 = vunpack.c.l.b16 %v812
    %v850 = vunpack.c.l.b16 %v813
    %v851 = vunpack.c.l.b16 %v814
    %v852 = vunpack.c.l.b16 %v815
    %v853 = vunpack.c.l.b16 %v816
    %v854 = vunpack.c.l.b16 %v817
    %v855 = vunpack.c.l.b16 %v818
    %v856 = vunpack.c.l.b16 %v819
    %v857 = vunpack.c.l.b16 %v820
    %v858 = vunpack.c.l.b16 %v821
    %v859 = vunpack.c.l.b16 %v822
    %v860 = vunpack.c.l.b16 %v823
    %v861 = vunpack.c.l.b16 %v824
    %v862 = vunpack.c.l.b16 %v825
    %v863 = vunpack.c.l.b16 %v826
    %v864 = vunpack.c.l.b16 %v827
    %v865 = vpack.c.b16 %v850, %v849
    %v866 = vpack.c.b16 %v852, %v851
    %v867 = vpack.c.b16 %v854, %v853
    %v868 = vpack.c.b16 %v856, %v855
    %v869 = vpack.c.b16 %v858, %v857
    %v870 = vpack.c.b16 %v860, %v859
    %v871 = vpack.c.b16 %v862, %v861
    %v872 = vpack.c.b16 %v864, %v863
    %881 = vmatpush.bf16.msra.mxu0 %v872
    %882 = vmatpush.bf16.msra.mxu0 %v871
    %883 = vmatpush.bf16.msra.mxu0 %v870
    %884 = vmatpush.bf16.msra.mxu0 %v869
    %885 = vmatpush.bf16.msra.mxu0 %v868
    %886 = vmatpush.bf16.msra.mxu0 %v867
    %887 = vmatpush.bf16.msra.mxu0 %v866
    %888 = vmatpush.bf16.msra.mxu0 %v865
    %889 = vmatmul.bf16.gmra.mxu0 %v828
    %v890 = vpop.f32.mrf.mxu0
    %v891 = vadd.f32 %v831, %v890
    %v892 = vpop.f32.mrf.mxu0
    %v893 = vadd.f32 %v831, %v892
    %894 = vdwg.mxu0
    %v895 = vxor.u32 %v891, 2147483648
    %v896 = vxor.u32 %v893, 2147483648
    %v897 = vmul.f32 %v895, 1.442695
    %v898 = vpow.pop %v897
    %v899 = vmul.f32 %v896, 1.442695
    %v900 = vpow.pop %v899
    %v901 = vadd.f32 %v898, 1.0
    %v902 = vadd.f32 %v900, 1.0
    %v903 = vrcp.pop %v901
    %v904 = vmul.f32 %v901, %v903
    %v905 = vsub.f32 1.0, %v904
    %v906 = vmul.f32 %v903, %v905
    %v907 = vadd.f32 %v903, %v906
    %vm908 = vweird.f32 %v901
    %vm909 = vweird.f32 %v903
    %vm910 = vmor %vm908, %vm909
    %v911 = vsel %vm910, %v903, %v907
    %v912 = vand.u32 2147483647, %v901
    %vm913 = vcmp.eq.f32.partialorder %v912, 8.507059e+37
    %v914 = vand.u32 %v901, 2147483648
    %v915 = vor.u32 1.1754944e-38, %v914
    %v916 = vsel %vm913, %v915, %v911
    %v917 = vmul.f32 1.0, %v916
    %v918 = vrcp.pop %v902
    %v919 = vmul.f32 %v902, %v918
    %v920 = vsub.f32 1.0, %v919
    %v921 = vmul.f32 %v918, %v920
    %v922 = vadd.f32 %v918, %v921
    %vm923 = vweird.f32 %v902
    %vm924 = vweird.f32 %v918
    %vm925 = vmor %vm923, %vm924
    %v926 = vsel %vm925, %v918, %v922
    %v927 = vand.u32 2147483647, %v902
    %vm928 = vcmp.eq.f32.partialorder %v927, 8.507059e+37
    %v929 = vand.u32 %v902, 2147483648
    %v930 = vor.u32 1.1754944e-38, %v929
    %v931 = vsel %vm928, %v930, %v926
    %v932 = vmul.f32 1.0, %v931
    %v933 = vmul.f32 %v891, %v917
    %v934 = vmul.f32 %v893, %v932
    %v935 = vadd.f32 %v933, %v564
    %v936 = vadd.f32 %v934, %v565
    %v937 = vxor.u32 %v935, 2147483648
    %v938 = vxor.u32 %v936, 2147483648
    %v939 = vmul.f32 %v937, 1.442695
    %v940 = vpow.pop %v939
    %v941 = vmul.f32 %v938, 1.442695
    %v942 = vpow.pop %v941
    %v943 = vadd.f32 %v940, 1.0
    %v944 = vadd.f32 %v942, 1.0
    %v945 = vrcp.pop %v943
    %v946 = vmul.f32 %v943, %v945
    %v947 = vsub.f32 1.0, %v946
    %v948 = vmul.f32 %v945, %v947
    %v949 = vadd.f32 %v945, %v948
    %vm950 = vweird.f32 %v943
    %vm951 = vweird.f32 %v945
    %vm952 = vmor %vm950, %vm951
    %v953 = vsel %vm952, %v945, %v949
    %v954 = vand.u32 2147483647, %v943
    %vm955 = vcmp.eq.f32.partialorder %v954, 8.507059e+37
    %v956 = vand.u32 %v943, 2147483648
    %v957 = vor.u32 1.1754944e-38, %v956
    %v958 = vsel %vm955, %v957, %v953
    %v959 = vmul.f32 1.0, %v958
    %v960 = vrcp.pop %v944
    %v961 = vmul.f32 %v944, %v960
    %v962 = vsub.f32 1.0, %v961
    %v963 = vmul.f32 %v960, %v962
    %v964 = vadd.f32 %v960, %v963
    %vm965 = vweird.f32 %v944
    %vm966 = vweird.f32 %v960
    %vm967 = vmor %vm965, %vm966
    %v968 = vsel %vm967, %v960, %v964
    %v969 = vand.u32 2147483647, %v944
    %vm970 = vcmp.eq.f32.partialorder %v969, 8.507059e+37
    %v971 = vand.u32 %v944, 2147483648
    %v972 = vor.u32 1.1754944e-38, %v971
    %v973 = vsel %vm970, %v972, %v968
    %v974 = vmul.f32 1.0, %v973
    %v975 = vmul.f32 %v935, %v959
    %v976 = vmul.f32 %v936, %v974
    %977 = vst [vmem:[#allocation19] sm:$0xff] %v975
    %978 = vst [vmem:[#allocation19 + $0x8] sm:$0xff] %v976
    %s979 = scalar_lea.vmem [#allocation14], 64
    %v980 = vld [vmem:[%s979] sm:$0xf]
    %v981 = vld [vmem:[%s979 + $0x4] sm:$0xf]
    %v982 = vld [vmem:[%s979 + $0x8] sm:$0xf]
    %v983 = vld [vmem:[%s979 + $0xc] sm:$0xf]
    %v984 = vld [vmem:[%s979 + $0x10] sm:$0xf]
    %v985 = vld [vmem:[%s979 + $0x14] sm:$0xf]
    %v986 = vld [vmem:[%s979 + $0x18] sm:$0xf]
    %v987 = vld [vmem:[%s979 + $0x1c] sm:$0xf]
    %v988 = vld [vmem:[%s979 + $0x20] sm:$0xf]
    %v989 = vld [vmem:[%s979 + $0x24] sm:$0xf]
    %v990 = vld [vmem:[%s979 + $0x28] sm:$0xf]
    %v991 = vld [vmem:[%s979 + $0x2c] sm:$0xf]
    %v992 = vld [vmem:[%s979 + $0x30] sm:$0xf]
    %v993 = vld [vmem:[%s979 + $0x34] sm:$0xf]
    %v994 = vld [vmem:[%s979 + $0x38] sm:$0xf]
    %v995 = vld [vmem:[%s979 + $0x3c] sm:$0xf]
    %v996 = vpack.c.bf16 %v976, %v975
    %s997 = scalar_lea.vmem %s8, 1
    %v998 = vld [vmem:[%s997] sm:$0x1]
    %v1000 = vperm.slane %v998, 0
    %v1018 = vunpack.c.l.b16 %v980
    %v1019 = vunpack.c.l.b16 %v981
    %v1020 = vunpack.c.l.b16 %v982
    %v1021 = vunpack.c.l.b16 %v983
    %v1022 = vunpack.c.l.b16 %v984
    %v1023 = vunpack.c.l.b16 %v985
    %v1024 = vunpack.c.l.b16 %v986
    %v1025 = vunpack.c.l.b16 %v987
    %v1026 = vunpack.c.l.b16 %v988
    %v1027 = vunpack.c.l.b16 %v989
    %v1028 = vunpack.c.l.b16 %v990
    %v1029 = vunpack.c.l.b16 %v991
    %v1030 = vunpack.c.l.b16 %v992
    %v1031 = vunpack.c.l.b16 %v993
    %v1032 = vunpack.c.l.b16 %v994
    %v1033 = vunpack.c.l.b16 %v995
    %v1034 = vpack.c.b16 %v1019, %v1018
    %v1035 = vpack.c.b16 %v1021, %v1020
    %v1036 = vpack.c.b16 %v1023, %v1022
    %v1037 = vpack.c.b16 %v1025, %v1024
    %v1038 = vpack.c.b16 %v1027, %v1026
    %v1039 = vpack.c.b16 %v1029, %v1028
    %v1040 = vpack.c.b16 %v1031, %v1030
    %v1041 = vpack.c.b16 %v1033, %v1032
    %1050 = vmatpush.bf16.msra.mxu0 %v1041
    %1051 = vmatpush.bf16.msra.mxu0 %v1040
    %1052 = vmatpush.bf16.msra.mxu0 %v1039
    %1053 = vmatpush.bf16.msra.mxu0 %v1038
    %1054 = vmatpush.bf16.msra.mxu0 %v1037
    %1055 = vmatpush.bf16.msra.mxu0 %v1036
    %1056 = vmatpush.bf16.msra.mxu0 %v1035
    %1057 = vmatpush.bf16.msra.mxu0 %v1034
    %1058 = vmatmul.bf16.gmra.mxu0 %v996
    %v1059 = vpop.f32.mrf.mxu0
    %v1060 = vadd.f32 %v1000, %v1059
    %v1061 = vpop.f32.mrf.mxu0
    %v1062 = vadd.f32 %v1000, %v1061
    %1063 = vdwg.mxu0
    %v1064 = vxor.u32 %v1060, 2147483648
    %v1065 = vxor.u32 %v1062, 2147483648
    %v1066 = vmul.f32 %v1064, 1.442695
    %v1067 = vpow.pop %v1066
    %v1068 = vmul.f32 %v1065, 1.442695
    %v1069 = vpow.pop %v1068
    %v1070 = vadd.f32 %v1067, 1.0
    %v1071 = vadd.f32 %v1069, 1.0
    %v1072 = vrcp.pop %v1070
    %v1073 = vmul.f32 %v1070, %v1072
    %v1074 = vsub.f32 1.0, %v1073
    %v1075 = vmul.f32 %v1072, %v1074
    %v1076 = vadd.f32 %v1072, %v1075
    %vm1077 = vweird.f32 %v1070
    %vm1078 = vweird.f32 %v1072
    %vm1079 = vmor %vm1077, %vm1078
    %v1080 = vsel %vm1079, %v1072, %v1076
    %v1081 = vand.u32 2147483647, %v1070
    %vm1082 = vcmp.eq.f32.partialorder %v1081, 8.507059e+37
    %v1083 = vand.u32 %v1070, 2147483648
    %v1084 = vor.u32 1.1754944e-38, %v1083
    %v1085 = vsel %vm1082, %v1084, %v1080
    %v1086 = vmul.f32 1.0, %v1085
    %v1087 = vrcp.pop %v1071
    %v1088 = vmul.f32 %v1071, %v1087
    %v1089 = vsub.f32 1.0, %v1088
    %v1090 = vmul.f32 %v1087, %v1089
    %v1091 = vadd.f32 %v1087, %v1090
    %vm1092 = vweird.f32 %v1071
    %vm1093 = vweird.f32 %v1087
    %vm1094 = vmor %vm1092, %vm1093
    %v1095 = vsel %vm1094, %v1087, %v1091
    %v1096 = vand.u32 2147483647, %v1071
    %vm1097 = vcmp.eq.f32.partialorder %v1096, 8.507059e+37
    %v1098 = vand.u32 %v1071, 2147483648
    %v1099 = vor.u32 1.1754944e-38, %v1098
    %v1100 = vsel %vm1097, %v1099, %v1095
    %v1101 = vmul.f32 1.0, %v1100
    %v1102 = vmul.f32 %v1060, %v1086
    %v1103 = vmul.f32 %v1062, %v1101
    %s1104 = scalar_lea.vmem [#allocation16], 64
    %v1105 = vld [vmem:[%s1104] sm:$0xf]
    %v1106 = vld [vmem:[%s1104 + $0x4] sm:$0xf]
    %v1107 = vld [vmem:[%s1104 + $0x8] sm:$0xf]
    %v1108 = vld [vmem:[%s1104 + $0xc] sm:$0xf]
    %v1109 = vld [vmem:[%s1104 + $0x10] sm:$0xf]
    %v1110 = vld [vmem:[%s1104 + $0x14] sm:$0xf]
    %v1111 = vld [vmem:[%s1104 + $0x18] sm:$0xf]
    %v1112 = vld [vmem:[%s1104 + $0x1c] sm:$0xf]
    %v1113 = vld [vmem:[%s1104 + $0x20] sm:$0xf]
    %v1114 = vld [vmem:[%s1104 + $0x24] sm:$0xf]
    %v1115 = vld [vmem:[%s1104 + $0x28] sm:$0xf]
    %v1116 = vld [vmem:[%s1104 + $0x2c] sm:$0xf]
    %v1117 = vld [vmem:[%s1104 + $0x30] sm:$0xf]
    %v1118 = vld [vmem:[%s1104 + $0x34] sm:$0xf]
    %v1119 = vld [vmem:[%s1104 + $0x38] sm:$0xf]
    %v1120 = vld [vmem:[%s1104 + $0x3c] sm:$0xf]
    %v1121 = vpack.c.bf16 %v1103, %v1102
    %s1122 = scalar_lea.vmem %s10, 1
    %v1123 = vld [vmem:[%s1122] sm:$0x1]
    %v1125 = vperm.slane %v1123, 0
    %v1143 = vunpack.c.l.b16 %v1105
    %v1144 = vunpack.c.l.b16 %v1106
    %v1145 = vunpack.c.l.b16 %v1107
    %v1146 = vunpack.c.l.b16 %v1108
    %v1147 = vunpack.c.l.b16 %v1109
    %v1148 = vunpack.c.l.b16 %v1110
    %v1149 = vunpack.c.l.b16 %v1111
    %v1150 = vunpack.c.l.b16 %v1112
    %v1151 = vunpack.c.l.b16 %v1113
    %v1152 = vunpack.c.l.b16 %v1114
    %v1153 = vunpack.c.l.b16 %v1115
    %v1154 = vunpack.c.l.b16 %v1116
    %v1155 = vunpack.c.l.b16 %v1117
    %v1156 = vunpack.c.l.b16 %v1118
    %v1157 = vunpack.c.l.b16 %v1119
    %v1158 = vunpack.c.l.b16 %v1120
    %v1159 = vpack.c.b16 %v1144, %v1143
    %v1160 = vpack.c.b16 %v1146, %v1145
    %v1161 = vpack.c.b16 %v1148, %v1147
    %v1162 = vpack.c.b16 %v1150, %v1149
    %v1163 = vpack.c.b16 %v1152, %v1151
    %v1164 = vpack.c.b16 %v1154, %v1153
    %v1165 = vpack.c.b16 %v1156, %v1155
    %v1166 = vpack.c.b16 %v1158, %v1157
    %1175 = vmatpush.bf16.msra.mxu0 %v1166
    %1176 = vmatpush.bf16.msra.mxu0 %v1165
    %1177 = vmatpush.bf16.msra.mxu0 %v1164
    %1178 = vmatpush.bf16.msra.mxu0 %v1163
    %1179 = vmatpush.bf16.msra.mxu0 %v1162
    %1180 = vmatpush.bf16.msra.mxu0 %v1161
    %1181 = vmatpush.bf16.msra.mxu0 %v1160
    %1182 = vmatpush.bf16.msra.mxu0 %v1159
    %1183 = vmatmul.bf16.gmra.mxu0 %v1121
    %v1184 = vpop.f32.mrf.mxu0
    %v1185 = vadd.f32 %v1125, %v1184
    %v1186 = vpop.f32.mrf.mxu0
    %v1187 = vadd.f32 %v1125, %v1186
    %1188 = vdwg.mxu0
    %v1189 = vxor.u32 %v1185, 2147483648
    %v1190 = vxor.u32 %v1187, 2147483648
    %v1191 = vmul.f32 %v1189, 1.442695
    %v1192 = vpow.pop %v1191
    %v1193 = vmul.f32 %v1190, 1.442695
    %v1194 = vpow.pop %v1193
    %v1195 = vadd.f32 %v1192, 1.0
    %v1196 = vadd.f32 %v1194, 1.0
    %v1197 = vrcp.pop %v1195
    %v1198 = vmul.f32 %v1195, %v1197
    %v1199 = vsub.f32 1.0, %v1198
    %v1200 = vmul.f32 %v1197, %v1199
    %v1201 = vadd.f32 %v1197, %v1200
    %vm1202 = vweird.f32 %v1195
    %vm1203 = vweird.f32 %v1197
    %vm1204 = vmor %vm1202, %vm1203
    %v1205 = vsel %vm1204, %v1197, %v1201
    %v1206 = vand.u32 2147483647, %v1195
    %vm1207 = vcmp.eq.f32.partialorder %v1206, 8.507059e+37
    %v1208 = vand.u32 %v1195, 2147483648
    %v1209 = vor.u32 1.1754944e-38, %v1208
    %v1210 = vsel %vm1207, %v1209, %v1205
    %v1211 = vmul.f32 1.0, %v1210
    %v1212 = vrcp.pop %v1196
    %v1213 = vmul.f32 %v1196, %v1212
    %v1214 = vsub.f32 1.0, %v1213
    %v1215 = vmul.f32 %v1212, %v1214
    %v1216 = vadd.f32 %v1212, %v1215
    %vm1217 = vweird.f32 %v1196
    %vm1218 = vweird.f32 %v1212
    %vm1219 = vmor %vm1217, %vm1218
    %v1220 = vsel %vm1219, %v1212, %v1216
    %v1221 = vand.u32 2147483647, %v1196
    %vm1222 = vcmp.eq.f32.partialorder %v1221, 8.507059e+37
    %v1223 = vand.u32 %v1196, 2147483648
    %v1224 = vor.u32 1.1754944e-38, %v1223
    %v1225 = vsel %vm1222, %v1224, %v1220
    %v1226 = vmul.f32 1.0, %v1225
    %v1227 = vmul.f32 %v1185, %v1211
    %v1228 = vmul.f32 %v1187, %v1226
    %s1229 = scalar_lea.vmem [#allocation17], 64
    %v1230 = vld [vmem:[%s1229] sm:$0xf]
    %v1231 = vld [vmem:[%s1229 + $0x4] sm:$0xf]
    %v1232 = vld [vmem:[%s1229 + $0x8] sm:$0xf]
    %v1233 = vld [vmem:[%s1229 + $0xc] sm:$0xf]
    %v1234 = vld [vmem:[%s1229 + $0x10] sm:$0xf]
    %v1235 = vld [vmem:[%s1229 + $0x14] sm:$0xf]
    %v1236 = vld [vmem:[%s1229 + $0x18] sm:$0xf]
    %v1237 = vld [vmem:[%s1229 + $0x1c] sm:$0xf]
    %v1238 = vld [vmem:[%s1229 + $0x20] sm:$0xf]
    %v1239 = vld [vmem:[%s1229 + $0x24] sm:$0xf]
    %v1240 = vld [vmem:[%s1229 + $0x28] sm:$0xf]
    %v1241 = vld [vmem:[%s1229 + $0x2c] sm:$0xf]
    %v1242 = vld [vmem:[%s1229 + $0x30] sm:$0xf]
    %v1243 = vld [vmem:[%s1229 + $0x34] sm:$0xf]
    %v1244 = vld [vmem:[%s1229 + $0x38] sm:$0xf]
    %v1245 = vld [vmem:[%s1229 + $0x3c] sm:$0xf]
    %v1246 = vpack.c.bf16 %v1228, %v1227
    %s1247 = scalar_lea.vmem %s12, 1
    %v1248 = vld [vmem:[%s1247] sm:$0x1]
    %v1250 = vperm.slane %v1248, 0
    %v1268 = vunpack.c.l.b16 %v1230
    %v1269 = vunpack.c.l.b16 %v1231
    %v1270 = vunpack.c.l.b16 %v1232
    %v1271 = vunpack.c.l.b16 %v1233
    %v1272 = vunpack.c.l.b16 %v1234
    %v1273 = vunpack.c.l.b16 %v1235
    %v1274 = vunpack.c.l.b16 %v1236
    %v1275 = vunpack.c.l.b16 %v1237
    %v1276 = vunpack.c.l.b16 %v1238
    %v1277 = vunpack.c.l.b16 %v1239
    %v1278 = vunpack.c.l.b16 %v1240
    %v1279 = vunpack.c.l.b16 %v1241
    %v1280 = vunpack.c.l.b16 %v1242
    %v1281 = vunpack.c.l.b16 %v1243
    %v1282 = vunpack.c.l.b16 %v1244
    %v1283 = vunpack.c.l.b16 %v1245
    %v1284 = vpack.c.b16 %v1269, %v1268
    %v1285 = vpack.c.b16 %v1271, %v1270
    %v1286 = vpack.c.b16 %v1273, %v1272
    %v1287 = vpack.c.b16 %v1275, %v1274
    %v1288 = vpack.c.b16 %v1277, %v1276
    %v1289 = vpack.c.b16 %v1279, %v1278
    %v1290 = vpack.c.b16 %v1281, %v1280
    %v1291 = vpack.c.b16 %v1283, %v1282
    %1300 = vmatpush.bf16.msra.mxu0 %v1291
    %1301 = vmatpush.bf16.msra.mxu0 %v1290
    %1302 = vmatpush.bf16.msra.mxu0 %v1289
    %1303 = vmatpush.bf16.msra.mxu0 %v1288
    %1304 = vmatpush.bf16.msra.mxu0 %v1287
    %1305 = vmatpush.bf16.msra.mxu0 %v1286
    %1306 = vmatpush.bf16.msra.mxu0 %v1285
    %1307 = vmatpush.bf16.msra.mxu0 %v1284
    %1308 = vmatmul.bf16.gmra.mxu0 %v1246
    %v1309 = vpop.f32.mrf.mxu0
    %v1310 = vadd.f32 %v1250, %v1309
    %v1311 = vpop.f32.mrf.mxu0
    %v1312 = vadd.f32 %v1250, %v1311
    %1313 = vdwg.mxu0
    %v1314 = vxor.u32 %v1310, 2147483648
    %v1315 = vxor.u32 %v1312, 2147483648
    %v1316 = vmul.f32 %v1314, 1.442695
    %v1317 = vpow.pop %v1316
    %v1318 = vmul.f32 %v1315, 1.442695
    %v1319 = vpow.pop %v1318
    %v1320 = vadd.f32 %v1317, 1.0
    %v1321 = vadd.f32 %v1319, 1.0
    %v1322 = vrcp.pop %v1320
    %v1323 = vmul.f32 %v1320, %v1322
    %v1324 = vsub.f32 1.0, %v1323
    %v1325 = vmul.f32 %v1322, %v1324
    %v1326 = vadd.f32 %v1322, %v1325
    %vm1327 = vweird.f32 %v1320
    %vm1328 = vweird.f32 %v1322
    %vm1329 = vmor %vm1327, %vm1328
    %v1330 = vsel %vm1329, %v1322, %v1326
    %v1331 = vand.u32 2147483647, %v1320
    %vm1332 = vcmp.eq.f32.partialorder %v1331, 8.507059e+37
    %v1333 = vand.u32 %v1320, 2147483648
    %v1334 = vor.u32 1.1754944e-38, %v1333
    %v1335 = vsel %vm1332, %v1334, %v1330
    %v1336 = vmul.f32 1.0, %v1335
    %v1337 = vrcp.pop %v1321
    %v1338 = vmul.f32 %v1321, %v1337
    %v1339 = vsub.f32 1.0, %v1338
    %v1340 = vmul.f32 %v1337, %v1339
    %v1341 = vadd.f32 %v1337, %v1340
    %vm1342 = vweird.f32 %v1321
    %vm1343 = vweird.f32 %v1337
    %vm1344 = vmor %vm1342, %vm1343
    %v1345 = vsel %vm1344, %v1337, %v1341
    %v1346 = vand.u32 2147483647, %v1321
    %vm1347 = vcmp.eq.f32.partialorder %v1346, 8.507059e+37
    %v1348 = vand.u32 %v1321, 2147483648
    %v1349 = vor.u32 1.1754944e-38, %v1348
    %v1350 = vsel %vm1347, %v1349, %v1345
    %v1351 = vmul.f32 1.0, %v1350
    %v1352 = vmul.f32 %v1310, %v1336
    %v1353 = vmul.f32 %v1312, %v1351
    %v1354 = vadd.f32 %v1352, %v975
    %v1355 = vadd.f32 %v1353, %v976
    %v1356 = vxor.u32 %v1354, 2147483648
    %v1357 = vxor.u32 %v1355, 2147483648
    %v1358 = vmul.f32 %v1356, 1.442695
    %v1359 = vpow.pop %v1358
    %v1360 = vmul.f32 %v1357, 1.442695
    %v1361 = vpow.pop %v1360
    %v1362 = vadd.f32 %v1359, 1.0
    %v1363 = vadd.f32 %v1361, 1.0
    %v1364 = vrcp.pop %v1362
    %v1365 = vmul.f32 %v1362, %v1364
    %v1366 = vsub.f32 1.0, %v1365
    %v1367 = vmul.f32 %v1364, %v1366
    %v1368 = vadd.f32 %v1364, %v1367
    %vm1369 = vweird.f32 %v1362
    %vm1370 = vweird.f32 %v1364
    %vm1371 = vmor %vm1369, %vm1370
    %v1372 = vsel %vm1371, %v1364, %v1368
    %v1373 = vand.u32 2147483647, %v1362
    %vm1374 = vcmp.eq.f32.partialorder %v1373, 8.507059e+37
    %v1375 = vand.u32 %v1362, 2147483648
    %v1376 = vor.u32 1.1754944e-38, %v1375
    %v1377 = vsel %vm1374, %v1376, %v1372
    %v1378 = vmul.f32 1.0, %v1377
    %v1379 = vrcp.pop %v1363
    %v1380 = vmul.f32 %v1363, %v1379
    %v1381 = vsub.f32 1.0, %v1380
    %v1382 = vmul.f32 %v1379, %v1381
    %v1383 = vadd.f32 %v1379, %v1382
    %vm1384 = vweird.f32 %v1363
    %vm1385 = vweird.f32 %v1379
    %vm1386 = vmor %vm1384, %vm1385
    %v1387 = vsel %vm1386, %v1379, %v1383
    %v1388 = vand.u32 2147483647, %v1363
    %vm1389 = vcmp.eq.f32.partialorder %v1388, 8.507059e+37
    %v1390 = vand.u32 %v1363, 2147483648
    %v1391 = vor.u32 1.1754944e-38, %v1390
    %v1392 = vsel %vm1389, %v1391, %v1387
    %v1393 = vmul.f32 1.0, %v1392
    %v1394 = vmul.f32 %v1354, %v1378
    %v1395 = vmul.f32 %v1355, %v1393
    %s1396 = scalar_lea.vmem [#allocation19], 16
    %1397 = vst [vmem:[%s1396] sm:$0xff] %v1394
    %1398 = vst [vmem:[%s1396 + $0x8] sm:$0xff] %v1395
    // Predicated region
    $region94: #{tpu_custom_call.1} parent=1 // pred_check
      _
    $region95: #{tpu_custom_call.1} parent=1 // pred_check_branch
      %1400 = sbr.rel (0) target = $region97
    $region96: #{tpu_custom_call.1} parent=1 // pred_region
      %1402 = vsyncadd [#allocation4], 0
      %s1403 = sshll.u32 [#allocation19], 4
      %s1404 = int_to_ptr.vmem [resolvable:$true] %s1403
      %s1405 = sshll.u32 %s13, 4
      %s1406 = int_to_ptr.hbm [resolvable:$true] %s1405
      %1411 = dma.vmem_to_hbm [thread:$0]  %s1404, 512, %s1406, [#allocation4], 128, 128, 8
    $region97: #{tpu_custom_call.1} parent=1 // pred_fallthru
      _
    // Predicated region
    $region98: #{tpu_custom_call.1} parent=1 // pred_check
      _
    $region99: #{tpu_custom_call.1} parent=1 // pred_check_branch
      %1413 = sbr.rel (0) target = $region101
    $region100: #{tpu_custom_call.1} parent=1 // pred_region
      %1415 = dma.done [#allocation4], 512
    $region101: #{tpu_custom_call.1} parent=1 // pred_fallthru
      _
    %1416 = vsyncpa [#allocation3], 1
    %1417 = vsyncpa [#allocation6], 1
    %1418 = vsyncpa [#allocation9], 1
    %1419 = vsyncpa [#allocation12], 1
    %1420 = vsyncpa [#allocation15], 1
    %1421 = vsyncpa [#allocation18], 1
    %1422 = vsyncpa [#allocation4], 1

</llo_original>
